<compile_context>
chip_gen: v5e
topology: v5e:2x2
jax: 0.10.0
libtpu: 0.0.40
codegen_flags: <defaults>
</compile_context>

<pallas_src>
import jax
import jax.numpy as jnp
from jax.experimental import pallas as pl
from jax.experimental.pallas import tpu as pltpu

# ----------------------- model configuration ---------------------------------
NUM_LAYERS = 3        # numberOfLayers
NUM_SUBLAYERS = 4     # linearSublayersNumber (dendritic branches)
INPUT_SIZE = 16       # inputLayerSize
HIDDEN_SIZE = 32      # hiddenLayerSize
OUTPUT_SIZE = 8       # outputLayerSize (num classes)

BATCH = 256           # total rows processed by the fused kernel
C_PAD = 128           # class dim padded to one full lane width
STAT_ROWS = 8         # sublane-aligned per-tile stats block (8, 128)


def _pick_tile_b(batch: int) -> int:
    """Per-generation batch tile.

    v7x (2 TensorCores): keep 128-row tiles so the even grid is sharded across
    both cores.  v5e/v6e (single TC): one big tile (<=256) -> grid of 1, no
    per-step pipeline overhead, and a full 256-deep MXU pass on v6e.
    """
    kind = ""
    try:
        kind = jax.devices()[0].device_kind.lower()
    except Exception:
        pass
    if "v7" in kind and batch % 256 == 0:
        return 128
    for t in (256, 128, 64, 32, 16, 8):
        if batch % t == 0:
            return t
    return batch


# ----------------------------- Pallas kernel ---------------------------------
def _make_lian_kernel(num_hidden_layers: int, num_sublayers: int,
                      hidden_size: int, num_classes: int, c_pad: int):
    """Fused LIANN forward over one batch tile + per-tile loss/acc partials."""
    span = num_sublayers * hidden_size
    pow2_sublayers = num_sublayers > 1 and (num_sublayers & (num_sublayers - 1)) == 0

    def kernel(*refs):
        # refs layout:
        #   inputs : x, y, (Wf_h, bf_h) * num_hidden_layers, W_out_pad, b_out_pad
        #   outputs: logp_pad (TB, C_PAD) bf16, stats (1, STAT_ROWS, C_PAD) f32
        x_ref, y_ref = refs[0], refs[1]
        idx = 2

        x = x_ref[...]                                            # (TB, in) f32

        # ---- hidden layers: fused segregated linear (1 matmul, S*H=128 lanes)
        #      -> performTopK (XLU roll-tree max over sublayer groups) -> ReLU
        for _ in range(num_hidden_layers):
            wf_ref, bf_ref = refs[idx], refs[idx + 1]
            idx += 2
            h = jnp.dot(x.astype(jnp.bfloat16), wf_ref[...],
                        preferred_element_type=jnp.float32) + bf_ref[...]
            if pow2_sublayers and span == h.shape[1]:
                m = h
                s = span // 2
                while s >= hidden_size:
                    m = jnp.maximum(m, pltpu.roll(m, s, axis=1))
                    s //= 2
                m = m[:, 0:hidden_size]
            else:
                m = h[:, 0:hidden_size]
                for s_ in range(1, num_sublayers):
                    m = jnp.maximum(m, h[:, s_ * hidden_size:(s_ + 1) * hidden_size])
            x = jnp.maximum(m, 0.0)                               # (TB, H)

        # ---- output layer: plain linear on the lane-padded class dim
        w_ref, b_ref = refs[idx], refs[idx + 1]
        idx += 2
        logits = jnp.dot(x.astype(jnp.bfloat16), w_ref[...],
                         preferred_element_type=jnp.float32) + b_ref[...]

        tb = logits.shape[0]
        lane = jax.lax.broadcasted_iota(jnp.int32, (tb, c_pad), 1)
        valid = lane < num_classes
        # finite sentinel (NOT -inf): 0 * (-inf) in the one_hot*logp sum -> NaN
        logits = jnp.where(valid, logits, jnp.float32(-1e30))

        # Softmax (dim=1) followed by log  == numerically-stable log-softmax
        row_max_l = jnp.max(logits, axis=1, keepdims=True)
        e = jnp.where(valid, jnp.exp(logits - row_max_l), 0.0)
        denom = jnp.sum(e, axis=1, keepdims=True)
        logp = (logits - row_max_l) - jnp.log(denom)              # (TB, C_PAD) f32

        logp_ref, stats_ref = refs[idx], refs[idx + 1]
        logp_ref[...] = logp.astype(logp_ref.dtype)               # bf16 store

        # ---- per-tile NLL sum and top-1 correct count (from the f32 logp)
        y = y_ref[...]                                            # (TB, 1) int32
        one_hot = (lane == y).astype(jnp.float32)                 # padded lanes never match
        nll_rows = -jnp.sum(one_hot * logp, axis=1, keepdims=True)   # (TB, 1)
        nll_tile = jnp.sum(nll_rows, axis=0, keepdims=True)          # (1, 1)

        # argmax with first-max tie-breaking (matches torch) via iota trick
        row_max_p = jnp.max(logp, axis=1, keepdims=True)
        idx_or_big = jnp.where(logp == row_max_p, lane, jnp.int32(c_pad))
        pred = jnp.min(idx_or_big, axis=1, keepdims=True)             # (TB, 1)
        correct_rows = (pred == y).astype(jnp.float32)
        correct_tile = jnp.sum(correct_rows, axis=0, keepdims=True)   # (1, 1)

        # tiny (8, 128) stats block: [0,0] = NLL sum, [0,1] = correct count
        srow = jax.lax.broadcasted_iota(jnp.int32, (STAT_ROWS, c_pad), 0)
        slane = jax.lax.broadcasted_iota(jnp.int32, (STAT_ROWS, c_pad), 1)
        stats_blk = jnp.where((srow == 0) & (slane == 0), nll_tile,
                              jnp.where((srow == 0) & (slane == 1),
                                        correct_tile, 0.0))
        stats_ref[0] = stats_blk

    return kernel


# ------------------------------ wrapper ---------------------------------------
def _fuse_hidden(w, b):
    """(S, in, H) weights / (S, 1, H) biases -> lane-dense fused (in, S*H)/(1, S*H)."""
    s, in_dim, h = w.shape
    wf = jnp.transpose(w, (1, 0, 2)).reshape(in_dim, s * h).astype(jnp.bfloat16)
    bf = jnp.transpose(b, (1, 0, 2)).reshape(1, s * h).astype(jnp.float32)
    return wf, bf


def _pad_output(w_out, b_out, c_pad):
    h, c = w_out.shape
    wp = jnp.zeros((h, c_pad), jnp.float32).at[:, :c].set(w_out).astype(jnp.bfloat16)
    bp = jnp.zeros((1, c_pad), jnp.float32).at[:, :c].set(b_out)
    return wp, bp


@jax.jit
def lian_forward(x, y, hidden_weights, hidden_biases, w_out, b_out):
    """Runs the fused LIANN forward kernel.

    x : (B, INPUT_SIZE) f32
    y : (B, 1) int32 class labels
    hidden_weights[l] : (S, in_l, H) f32      hidden_biases[l] : (S, 1, H) f32
    w_out : (H, C) f32                        b_out : (1, C) f32
    Returns (log-probs (B, C) bf16, loss scalar, accuracy scalar).
    """
    b_total = x.shape[0]
    c = w_out.shape[1]
    tile_b = _pick_tile_b(b_total)
    assert b_total % tile_b == 0, "BATCH must be a multiple of the batch tile"
    num_blocks = b_total // tile_b

    inputs = [x, y.astype(jnp.int32)]
    in_specs = [
        pl.BlockSpec((tile_b, x.shape[1]), lambda i: (i, 0)),
        pl.BlockSpec((tile_b, 1), lambda i: (i, 0)),
    ]
    for w, bb in zip(hidden_weights, hidden_biases):
        wf, bf = _fuse_hidden(w, bb)
        inputs += [wf, bf]
        in_specs += [
            pl.BlockSpec(wf.shape, lambda i: (0, 0)),
            pl.BlockSpec(bf.shape, lambda i: (0, 0)),
        ]
    wp, bp = _pad_output(w_out, b_out, C_PAD)
    inputs += [wp, bp]
    in_specs += [
        pl.BlockSpec(wp.shape, lambda i: (0, 0)),
        pl.BlockSpec(bp.shape, lambda i: (0, 0)),
    ]

    out_shape = (
        jax.ShapeDtypeStruct((b_total, C_PAD), jnp.bfloat16),               # padded log-probs
        jax.ShapeDtypeStruct((num_blocks, STAT_ROWS, C_PAD), jnp.float32),  # per-tile stats
    )
    out_specs = (
        pl.BlockSpec((tile_b, C_PAD), lambda i: (i, 0)),
        pl.BlockSpec((1, STAT_ROWS, C_PAD), lambda i: (i, 0, 0)),
    )

    kernel = _make_lian_kernel(len(hidden_weights), NUM_SUBLAYERS,
                               HIDDEN_SIZE, c, C_PAD)

    logp_pad, stats = pl.pallas_call(
        kernel,
        grid=(num_blocks,),
        in_specs=in_specs,
        out_specs=out_specs,
        out_shape=out_shape,
        compiler_params=pltpu.CompilerParams(
            dimension_semantics=("parallel",),
            vmem_limit_bytes=32 * 1024 * 1024),
    )(*inputs)

    totals = jnp.sum(stats, axis=(0, 1))                  # (C_PAD,): one tiny reduce
    loss = totals[0] / jnp.float32(b_total)               # NLLLoss mean reduction
    acc = totals[1] / jnp.float32(b_total)                # top-1 multiclass accuracy
    logp = logp_pad[:, :c]                                # fused inside this jit
    return logp, loss, acc


# --------------------------- pure-JAX reference -------------------------------
def lian_forward_ref(x, y, hidden_weights, hidden_biases, w_out, b_out):
    """Reference mirroring the kernel's bf16-input / f32-accumulate matmuls."""
    def bf(v):
        return v.astype(jnp.bfloat16).astype(jnp.float32)

    h = x.astype(jnp.float32)
    for w, b in zip(hidden_weights, hidden_biases):
        z = jnp.einsum("bi,sio->bso", bf(h), bf(w)) + jnp.transpose(b, (1, 0, 2))
        h = jnp.maximum(jnp.max(z, axis=1), 0.0)
    logits = bf(h) @ bf(w_out) + b_out
    logp = jax.nn.log_softmax(logits, axis=1)
    loss = -jnp.mean(logp[jnp.arange(h.shape[0]), y[:, 0]])
    acc = jnp.mean((jnp.argmax(logp, axis=1) == y[:, 0]).astype(jnp.float32))
    return logp, loss, acc


# --------------------------- parameter init -----------------------------------
def init_params(key):
    """Deterministic init; abs() mimics weightsSetPositiveModel (positive weights)."""
    hidden_weights, hidden_biases = [], []
    in_dim = INPUT_SIZE
    for _ in range(NUM_LAYERS - 1):
        key, kw, kb = jax.random.split(key, 3)
        bound = 1.0 / jnp.sqrt(in_dim)
        w = jnp.abs(jax.random.uniform(
            kw, (NUM_SUBLAYERS, in_dim, HIDDEN_SIZE),
            minval=-bound, maxval=bound, dtype=jnp.float32))
        b = jnp.abs(jax.random.uniform(
            kb, (NUM_SUBLAYERS, 1, HIDDEN_SIZE),
            minval=-bound, maxval=bound, dtype=jnp.float32))
        hidden_weights.append(w)
        hidden_biases.append(b)
        in_dim = HIDDEN_SIZE
    key, kw, kb = jax.random.split(key, 3)
    bound = 1.0 / jnp.sqrt(in_dim)
    w_out = jnp.abs(jax.random.uniform(
        kw, (in_dim, OUTPUT_SIZE), minval=-bound, maxval=bound, dtype=jnp.float32))
    b_out = jnp.abs(jax.random.uniform(
        kb, (1, OUTPUT_SIZE), minval=-bound, maxval=bound, dtype=jnp.float32))
    return hidden_weights, hidden_biases, w_out, b_out


# ----------------------------------- main --------------------------------------
if __name__ == "__main__":
    key = jax.random.PRNGKey(0)
    key, kx, ky, kp = jax.random.split(key, 4)

    x = jax.random.normal(kx, (BATCH, INPUT_SIZE), dtype=jnp.float32)
    y = jax.random.randint(ky, (BATCH, 1), 0, OUTPUT_SIZE, dtype=jnp.int32)

    hidden_weights, hidden_biases, w_out, b_out = init_params(kp)

    logp, loss, acc = lian_forward(x, y, hidden_weights, hidden_biases, w_out, b_out)
    jax.block_until_ready((logp, loss, acc))

    # correctness check against pure-JAX reference (same bf16 matmul precision)
    logp_r, loss_r, acc_r = lian_forward_ref(
        x, y, hidden_weights, hidden_biases, w_out, b_out)

    logp_f32 = logp.astype(jnp.float32)
    # returned log-probs are bf16 -> allow ~bf16 rounding of values in [-6, 0]
    assert jnp.allclose(logp_f32, logp_r, atol=3e-2, rtol=3e-2)
    # loss / accuracy are computed in-kernel from the f32 log-probs
    assert jnp.allclose(loss, loss_r, atol=3e-3, rtol=3e-3)
    # accuracy must agree with argmax of the returned log-probs up to at most
    # one flipped near-tie prediction from bf16 rounding of the stored logp
    acc_from_logp = jnp.mean(
        (jnp.argmax(logp_f32, axis=1) == y[:, 0]).astype(jnp.float32))
    assert jnp.abs(acc - acc_from_logp) <= (1.0 / BATCH) + 1e-6
    # loose cross-check against the reference (allows at most one flipped
    # prediction from bf16 accumulation-order differences)
    assert jnp.abs(acc - acc_r) <= (1.0 / BATCH) + 1e-6

    print("KERNEL_OK")
</pallas_src>

<mosaic_0001>
module attributes {stable_mosaic.version = 11 : i64} {
  func.func @kernel(%arg0: i32, %arg1: memref<256x16xf32, #tpu.memory_space<vmem>>, %arg2: memref<256x1xi32, #tpu.memory_space<vmem>>, %arg3: memref<16x128xbf16, #tpu.memory_space<vmem>>, %arg4: memref<1x128xf32, #tpu.memory_space<vmem>>, %arg5: memref<32x128xbf16, #tpu.memory_space<vmem>>, %arg6: memref<1x128xf32, #tpu.memory_space<vmem>>, %arg7: memref<32x128xbf16, #tpu.memory_space<vmem>>, %arg8: memref<1x128xf32, #tpu.memory_space<vmem>>, %arg9: memref<256x128xbf16, #tpu.memory_space<vmem>>, %arg10: memref<1x8x128xf32, #tpu.memory_space<vmem>>) attributes {dimension_semantics = [#tpu.dimension_semantics<parallel>], iteration_bounds = array<i64: 1>, scalar_prefetch = 0 : i64, scratch_operands = 0 : i64, tpu.core_type = #tpu.core_type<tc>, window_params = [{transform_indices = @transform_0, window_bounds = array<i64: 256, 16>}, {transform_indices = @transform_1, window_bounds = array<i64: 256, 1>}, {pipeline_mode = #tpu.pipeline_mode<synchronous>, transform_indices = @transform_2, window_bounds = array<i64: 16, 128>}, {pipeline_mode = #tpu.pipeline_mode<synchronous>, transform_indices = @transform_3, window_bounds = array<i64: 1, 128>}, {pipeline_mode = #tpu.pipeline_mode<synchronous>, transform_indices = @transform_4, window_bounds = array<i64: 32, 128>}, {pipeline_mode = #tpu.pipeline_mode<synchronous>, transform_indices = @transform_5, window_bounds = array<i64: 1, 128>}, {pipeline_mode = #tpu.pipeline_mode<synchronous>, transform_indices = @transform_6, window_bounds = array<i64: 32, 128>}, {pipeline_mode = #tpu.pipeline_mode<synchronous>, transform_indices = @transform_7, window_bounds = array<i64: 1, 128>}, {transform_indices = @transform_8, window_bounds = array<i64: 256, 128>}, {transform_indices = @transform_9, window_bounds = array<i64: 1, 8, 128>}]} {
    %c0 = arith.constant 0 : index
    %c0_0 = arith.constant 0 : index
    %0 = vector.load %arg1[%c0, %c0_0] : memref<256x16xf32, #tpu.memory_space<vmem>>, vector<256x16xf32>
    %1 = arith.truncf %0 : vector<256x16xf32> to vector<256x16xbf16>
    %c0_1 = arith.constant 0 : index
    %c0_2 = arith.constant 0 : index
    %2 = vector.load %arg3[%c0_1, %c0_2] : memref<16x128xbf16, #tpu.memory_space<vmem>>, vector<16x128xbf16>
    %cst = arith.constant dense<0.000000e+00> : vector<256x128xf32>
    %3 = tpu.matmul %1, %2, %cst {dimension_numbers = #tpu.dot_dimension_numbers<[1], [0], [0], [1], [0, 0, 1, 1], [], []>} : vector<256x16xbf16>, vector<16x128xbf16>, vector<256x128xf32> -> vector<256x128xf32>
    %c0_3 = arith.constant 0 : index
    %c0_4 = arith.constant 0 : index
    %4 = vector.load %arg4[%c0_3, %c0_4] : memref<1x128xf32, #tpu.memory_space<vmem>>, vector<1x128xf32>
    %5 = vector.broadcast %4 : vector<1x128xf32> to vector<256x128xf32>
    %6 = arith.addf %3, %5 : vector<256x128xf32>
    %c64_i32 = arith.constant 64 : i32
    %7 = tpu.dynamic_rotate %6 by %c64_i32 dim 1 : vector<256x128xf32>, i32 -> vector<256x128xf32>
    %8 = arith.maximumf %6, %7 : vector<256x128xf32>
    %c32_i32 = arith.constant 32 : i32
    %9 = tpu.dynamic_rotate %8 by %c32_i32 dim 1 : vector<256x128xf32>, i32 -> vector<256x128xf32>
    %10 = arith.maximumf %8, %9 : vector<256x128xf32>
    %11 = vector.extract_strided_slice %10 {offsets = [0, 0], sizes = [256, 32], strides = [1, 1]} : vector<256x128xf32> to vector<256x32xf32>
    %cst_5 = arith.constant 0.000000e+00 : f32
    %12 = vector.broadcast %cst_5 : f32 to vector<256x32xf32>
    %13 = arith.maximumf %11, %12 : vector<256x32xf32>
    %14 = arith.truncf %13 : vector<256x32xf32> to vector<256x32xbf16>
    %c0_6 = arith.constant 0 : index
    %c0_7 = arith.constant 0 : index
    %15 = vector.load %arg5[%c0_6, %c0_7] : memref<32x128xbf16, #tpu.memory_space<vmem>>, vector<32x128xbf16>
    %cst_8 = arith.constant dense<0.000000e+00> : vector<256x128xf32>
    %16 = tpu.matmul %14, %15, %cst_8 {dimension_numbers = #tpu.dot_dimension_numbers<[1], [0], [0], [1], [0, 0, 1, 1], [], []>} : vector<256x32xbf16>, vector<32x128xbf16>, vector<256x128xf32> -> vector<256x128xf32>
    %c0_9 = arith.constant 0 : index
    %c0_10 = arith.constant 0 : index
    %17 = vector.load %arg6[%c0_9, %c0_10] : memref<1x128xf32, #tpu.memory_space<vmem>>, vector<1x128xf32>
    %18 = vector.broadcast %17 : vector<1x128xf32> to vector<256x128xf32>
    %19 = arith.addf %16, %18 : vector<256x128xf32>
    %c64_i32_11 = arith.constant 64 : i32
    %20 = tpu.dynamic_rotate %19 by %c64_i32_11 dim 1 : vector<256x128xf32>, i32 -> vector<256x128xf32>
    %21 = arith.maximumf %19, %20 : vector<256x128xf32>
    %c32_i32_12 = arith.constant 32 : i32
    %22 = tpu.dynamic_rotate %21 by %c32_i32_12 dim 1 : vector<256x128xf32>, i32 -> vector<256x128xf32>
    %23 = arith.maximumf %21, %22 : vector<256x128xf32>
    %24 = vector.extract_strided_slice %23 {offsets = [0, 0], sizes = [256, 32], strides = [1, 1]} : vector<256x128xf32> to vector<256x32xf32>
    %cst_13 = arith.constant 0.000000e+00 : f32
    %25 = vector.broadcast %cst_13 : f32 to vector<256x32xf32>
    %26 = arith.maximumf %24, %25 : vector<256x32xf32>
    %27 = arith.truncf %26 : vector<256x32xf32> to vector<256x32xbf16>
    %c0_14 = arith.constant 0 : index
    %c0_15 = arith.constant 0 : index
    %28 = vector.load %arg7[%c0_14, %c0_15] : memref<32x128xbf16, #tpu.memory_space<vmem>>, vector<32x128xbf16>
    %cst_16 = arith.constant dense<0.000000e+00> : vector<256x128xf32>
    %29 = tpu.matmul %27, %28, %cst_16 {dimension_numbers = #tpu.dot_dimension_numbers<[1], [0], [0], [1], [0, 0, 1, 1], [], []>} : vector<256x32xbf16>, vector<32x128xbf16>, vector<256x128xf32> -> vector<256x128xf32>
    %c0_17 = arith.constant 0 : index
    %c0_18 = arith.constant 0 : index
    %30 = vector.load %arg8[%c0_17, %c0_18] : memref<1x128xf32, #tpu.memory_space<vmem>>, vector<1x128xf32>
    %31 = vector.broadcast %30 : vector<1x128xf32> to vector<256x128xf32>
    %32 = arith.addf %29, %31 : vector<256x128xf32>
    %33 = tpu.iota {dimensions = array<i32: 1>} : vector<256x128xi32>
    %c8_i32 = arith.constant 8 : i32
    %34 = vector.broadcast %c8_i32 : i32 to vector<256x128xi32>
    %35 = arith.cmpi slt, %33, %34 : vector<256x128xi32>
    %cst_19 = arith.constant -1.000000e+30 : f32
    %36 = vector.broadcast %cst_19 : f32 to vector<256x128xf32>
    %37 = arith.select %35, %32, %36 : vector<256x128xi1>, vector<256x128xf32>
    %cst_20 = arith.constant dense<0xFF800000> : vector<256xf32>
    %38 = vector.multi_reduction <maximumf>, %37, %cst_20 [1] : vector<256x128xf32> to vector<256xf32>
    %39 = vector.shape_cast %38 : vector<256xf32> to vector<256x1xf32>
    %40 = vector.broadcast %39 : vector<256x1xf32> to vector<256x128xf32>
    %41 = arith.subf %37, %40 : vector<256x128xf32>
    %42 = math.exp %41 : vector<256x128xf32>
    %cst_21 = arith.constant 0.000000e+00 : f32
    %43 = vector.broadcast %cst_21 : f32 to vector<256x128xf32>
    %44 = arith.select %35, %42, %43 : vector<256x128xi1>, vector<256x128xf32>
    %cst_22 = arith.constant dense<0.000000e+00> : vector<256xf32>
    %45 = vector.multi_reduction <add>, %44, %cst_22 [1] : vector<256x128xf32> to vector<256xf32>
    %46 = vector.shape_cast %45 : vector<256xf32> to vector<256x1xf32>
    %47 = vector.broadcast %39 : vector<256x1xf32> to vector<256x128xf32>
    %48 = arith.subf %37, %47 : vector<256x128xf32>
    %49 = math.log %46 : vector<256x1xf32>
    %50 = vector.broadcast %49 : vector<256x1xf32> to vector<256x128xf32>
    %51 = arith.subf %48, %50 : vector<256x128xf32>
    %52 = arith.truncf %51 : vector<256x128xf32> to vector<256x128xbf16>
    %c0_23 = arith.constant 0 : index
    %c0_24 = arith.constant 0 : index
    %53 = vector.load %arg9[%c0_23, %c0_24] : memref<256x128xbf16, #tpu.memory_space<vmem>>, vector<256x128xbf16>
    tpu.vector_store %arg9[%c0_23, %c0_24], %52 {strides = array<i32>} : memref<256x128xbf16, #tpu.memory_space<vmem>>, vector<256x128xbf16>,
    %c0_25 = arith.constant 0 : index
    %c0_26 = arith.constant 0 : index
    %54 = vector.load %arg2[%c0_25, %c0_26] : memref<256x1xi32, #tpu.memory_space<vmem>>, vector<256x1xi32>
    %55 = vector.broadcast %54 : vector<256x1xi32> to vector<256x128xi32>
    %56 = arith.cmpi eq, %33, %55 : vector<256x128xi32>
    %57 = arith.extui %56 : vector<256x128xi1> to vector<256x128xi32>
    %58 = arith.sitofp %57 : vector<256x128xi32> to vector<256x128xf32>
    %59 = arith.mulf %58, %51 : vector<256x128xf32>
    %cst_27 = arith.constant dense<0.000000e+00> : vector<256xf32>
    %60 = vector.multi_reduction <add>, %59, %cst_27 [1] : vector<256x128xf32> to vector<256xf32>
    %61 = vector.shape_cast %60 : vector<256xf32> to vector<256x1xf32>
    %cst_28 = arith.constant 0.000000e+00 : f32
    %62 = vector.broadcast %cst_28 : f32 to vector<256x1xf32>
    %63 = arith.subf %62, %61 : vector<256x1xf32>
    %cst_29 = arith.constant dense<0.000000e+00> : vector<1xf32>
    %64 = vector.multi_reduction <add>, %63, %cst_29 [0] : vector<256x1xf32> to vector<1xf32>
    %65 = vector.shape_cast %64 : vector<1xf32> to vector<1x1xf32>
    %cst_30 = arith.constant dense<0xFF800000> : vector<256xf32>
    %66 = vector.multi_reduction <maximumf>, %51, %cst_30 [1] : vector<256x128xf32> to vector<256xf32>
    %67 = vector.shape_cast %66 : vector<256xf32> to vector<256x1xf32>
    %68 = vector.broadcast %67 : vector<256x1xf32> to vector<256x128xf32>
    %69 = arith.cmpf oeq, %51, %68 : vector<256x128xf32>
    %c128_i32 = arith.constant 128 : i32
    %70 = vector.broadcast %c128_i32 : i32 to vector<256x128xi32>
    %71 = arith.select %69, %33, %70 : vector<256x128xi1>, vector<256x128xi32>
    %cst_31 = arith.constant dense<2147483647> : vector<256xi32>
    %72 = vector.multi_reduction <minsi>, %71, %cst_31 [1] : vector<256x128xi32> to vector<256xi32>
    %73 = vector.shape_cast %72 : vector<256xi32> to vector<256x1xi32>
    %74 = arith.cmpi eq, %73, %54 : vector<256x1xi32>
    %75 = arith.extui %74 : vector<256x1xi1> to vector<256x1xi32>
    %76 = arith.sitofp %75 : vector<256x1xi32> to vector<256x1xf32>
    %cst_32 = arith.constant dense<0.000000e+00> : vector<1xf32>
    %77 = vector.multi_reduction <add>, %76, %cst_32 [0] : vector<256x1xf32> to vector<1xf32>
    %78 = vector.shape_cast %77 : vector<1xf32> to vector<1x1xf32>
    %79 = tpu.iota {dimensions = array<i32: 0>} : vector<8x128xi32>
    %80 = tpu.iota {dimensions = array<i32: 1>} : vector<8x128xi32>
    %c0_i32 = arith.constant 0 : i32
    %81 = vector.broadcast %c0_i32 : i32 to vector<8x128xi32>
    %82 = arith.cmpi eq, %79, %81 : vector<8x128xi32>
    %c0_i32_33 = arith.constant 0 : i32
    %83 = vector.broadcast %c0_i32_33 : i32 to vector<8x128xi32>
    %84 = arith.cmpi eq, %80, %83 : vector<8x128xi32>
    %85 = arith.andi %82, %84 : vector<8x128xi1>
    %c0_i32_34 = arith.constant 0 : i32
    %86 = vector.broadcast %c0_i32_34 : i32 to vector<8x128xi32>
    %87 = arith.cmpi eq, %79, %86 : vector<8x128xi32>
    %c1_i32 = arith.constant 1 : i32
    %88 = vector.broadcast %c1_i32 : i32 to vector<8x128xi32>
    %89 = arith.cmpi eq, %80, %88 : vector<8x128xi32>
    %90 = arith.andi %87, %89 : vector<8x128xi1>
    %cst_35 = arith.constant 0.000000e+00 : f32
    %91 = vector.shape_cast %78 : vector<1x1xf32> to vector<1x1xf32>
    %92 = vector.broadcast %91 : vector<1x1xf32> to vector<8x128xf32>
    %93 = vector.broadcast %cst_35 : f32 to vector<8x128xf32>
    %94 = arith.select %90, %92, %93 : vector<8x128xi1>, vector<8x128xf32>
    %95 = vector.shape_cast %65 : vector<1x1xf32> to vector<1x1xf32>
    %96 = vector.broadcast %95 : vector<1x1xf32> to vector<8x128xf32>
    %97 = arith.select %85, %96, %94 : vector<8x128xi1>, vector<8x128xf32>
    %c0_36 = arith.constant 0 : index
    %c0_37 = arith.constant 0 : index
    %c0_38 = arith.constant 0 : index
    %98 = vector.load %arg10[%c0_36, %c0_37, %c0_38] : memref<1x8x128xf32, #tpu.memory_space<vmem>>, vector<1x8x128xf32>
    %99 = vector.shape_cast %98 : vector<1x8x128xf32> to vector<8x128xf32>
    %100 = vector.shape_cast %97 : vector<8x128xf32> to vector<1x8x128xf32>
    tpu.vector_store %arg10[%c0_36, %c0_37, %c0_38], %100 {strides = array<i32>} : memref<1x8x128xf32, #tpu.memory_space<vmem>>, vector<1x8x128xf32>,
    return
  }
  func.func @transform_0(%arg0: i32) -> (i32, i32) {
    %c0_i32 = arith.constant 0 : i32
    %c0_i32_0 = arith.constant 0 : i32
    return %arg0, %c0_i32 : i32, i32
  }
  func.func @transform_1(%arg0: i32) -> (i32, i32) {
    %c0_i32 = arith.constant 0 : i32
    %c0_i32_0 = arith.constant 0 : i32
    return %arg0, %c0_i32 : i32, i32
  }
  func.func @transform_2(%arg0: i32) -> (i32, i32) {
    %c0_i32 = arith.constant 0 : i32
    %c0_i32_0 = arith.constant 0 : i32
    %c0_i32_1 = arith.constant 0 : i32
    return %c0_i32, %c0_i32_0 : i32, i32
  }
  func.func @transform_3(%arg0: i32) -> (i32, i32) {
    %c0_i32 = arith.constant 0 : i32
    %c0_i32_0 = arith.constant 0 : i32
    %c0_i32_1 = arith.constant 0 : i32
    return %c0_i32, %c0_i32_0 : i32, i32
  }
  func.func @transform_4(%arg0: i32) -> (i32, i32) {
    %c0_i32 = arith.constant 0 : i32
    %c0_i32_0 = arith.constant 0 : i32
    %c0_i32_1 = arith.constant 0 : i32
    return %c0_i32, %c0_i32_0 : i32, i32
  }
  func.func @transform_5(%arg0: i32) -> (i32, i32) {
    %c0_i32 = arith.constant 0 : i32
    %c0_i32_0 = arith.constant 0 : i32
    %c0_i32_1 = arith.constant 0 : i32
    return %c0_i32, %c0_i32_0 : i32, i32
  }
  func.func @transform_6(%arg0: i32) -> (i32, i32) {
    %c0_i32 = arith.constant 0 : i32
    %c0_i32_0 = arith.constant 0 : i32
    %c0_i32_1 = arith.constant 0 : i32
    return %c0_i32, %c0_i32_0 : i32, i32
  }
  func.func @transform_7(%arg0: i32) -> (i32, i32) {
    %c0_i32 = arith.constant 0 : i32
    %c0_i32_0 = arith.constant 0 : i32
    %c0_i32_1 = arith.constant 0 : i32
    return %c0_i32, %c0_i32_0 : i32, i32
  }
  func.func @transform_8(%arg0: i32) -> (i32, i32) {
    %c0_i32 = arith.constant 0 : i32
    %c0_i32_0 = arith.constant 0 : i32
    return %arg0, %c0_i32 : i32, i32
  }
  func.func @transform_9(%arg0: i32) -> (i32, i32, i32) {
    %c0_i32 = arith.constant 0 : i32
    %c0_i32_0 = arith.constant 0 : i32
    %c0_i32_1 = arith.constant 0 : i32
    return %arg0, %c0_i32, %c0_i32_0 : i32, i32, i32
  }
}

</mosaic_0001>

<llo_original>
// kernel: lian_forward.1
$region0: #{lian_forward.1}
  #allocation0 [shape = 'u32[]', space=smem, size = 0x4, offset = 0x4, fixed_abs, tag = 'smem constant byte address 0x4 - core index']
  #allocation1 [shape = 'u32[72,128]{1,0:T(1,128)}', space=vmem, size = 0x9000, scoped, tag = 'internal scratch']
  %s0 = inlined_call_operand.vmem [shape: f32[256,16], index: 0, kind: input, shape index: {}]
  %s1 = inlined_call_operand.vmem [shape: s32[256,1], index: 1, kind: input, shape index: {}]
  %s2 = inlined_call_operand.vmem [shape: bf16[16,128], index: 2, kind: input, shape index: {}]
  %s3 = inlined_call_operand.vmem [shape: f32[1,128], index: 3, kind: input, shape index: {}]
  %s4 = inlined_call_operand.vmem [shape: bf16[32,128], index: 4, kind: input, shape index: {}]
  %s5 = inlined_call_operand.vmem [shape: f32[1,128], index: 5, kind: input, shape index: {}]
  %s6 = inlined_call_operand.vmem [shape: bf16[32,128], index: 6, kind: input, shape index: {}]
  %s7 = inlined_call_operand.vmem [shape: f32[1,128], index: 7, kind: input, shape index: {}]
  %s8 = inlined_call_operand.vmem [shape: bf16[256,128], index: 8, kind: output, shape index: {0}]
  %s9 = inlined_call_operand.vmem [shape: f32[1,8,128], index: 9, kind: output, shape index: {1}]
  %10 = xla_tuple %s8, %s9
  %s11 = sld [smem:[#allocation0]]
  $region50: #{lian_forward.1} parent=0
    _
  %s13 = ssub.s32 1, %s11
  %s14 = scalar_select 0, %s13, %s11
  // Predicated region
  $region2: #{lian_forward.1} parent=0 // pred_check
    _
  $region3: #{lian_forward.1} parent=0 // pred_check_branch
    %16 = sbr.rel (0) target = $region5
  $region4: #{lian_forward.1} parent=0 // pred_region
    _
  $region5: #{lian_forward.1} parent=0 // pred_fallthru
    _
  // Predicated region
  $region6: #{lian_forward.1} parent=0 // pred_check
    _
  $region7: #{lian_forward.1} parent=0 // pred_check_branch
    %18 = sbr.rel (0) target = $region9
  $region8: #{lian_forward.1} parent=0 // pred_region
    _
  $region9: #{lian_forward.1} parent=0 // pred_fallthru
    _
  // Predicated region
  $region10: #{lian_forward.1} parent=0 // pred_check
    _
  $region11: #{lian_forward.1} parent=0 // pred_check_branch
    %20 = sbr.rel (0) target = $region13
  $region12: #{lian_forward.1} parent=0 // pred_region
    _
  $region13: #{lian_forward.1} parent=0 // pred_fallthru
    _
  // Predicated region
  $region14: #{lian_forward.1} parent=0 // pred_check
    _
  $region15: #{lian_forward.1} parent=0 // pred_check_branch
    %22 = sbr.rel (0) target = $region17
  $region16: #{lian_forward.1} parent=0 // pred_region
    _
  $region17: #{lian_forward.1} parent=0 // pred_fallthru
    _
  // Predicated region
  $region18: #{lian_forward.1} parent=0 // pred_check
    _
  $region19: #{lian_forward.1} parent=0 // pred_check_branch
    %24 = sbr.rel (0) target = $region21
  $region20: #{lian_forward.1} parent=0 // pred_region
    _
  $region21: #{lian_forward.1} parent=0 // pred_fallthru
    _
  // Predicated region
  $region22: #{lian_forward.1} parent=0 // pred_check
    _
  $region23: #{lian_forward.1} parent=0 // pred_check_branch
    %26 = sbr.rel (0) target = $region25
  $region24: #{lian_forward.1} parent=0 // pred_region
    _
  $region25: #{lian_forward.1} parent=0 // pred_fallthru
    _
  // Predicated region
  $region26: #{lian_forward.1} parent=0 // pred_check
    _
  $region27: #{lian_forward.1} parent=0 // pred_check_branch
    %28 = sbr.rel (0) target = $region29
  $region28: #{lian_forward.1} parent=0 // pred_region
    _
  $region29: #{lian_forward.1} parent=0 // pred_fallthru
    _
  // Predicated region
  $region30: #{lian_forward.1} parent=0 // pred_check
    _
  $region31: #{lian_forward.1} parent=0 // pred_check_branch
    %30 = sbr.rel (0) target = $region33
  $region32: #{lian_forward.1} parent=0 // pred_region
    _
  $region33: #{lian_forward.1} parent=0 // pred_fallthru
    _
  %v32 = vld [vmem:[%s0] sm:$0xff]
  %v33 = vld [vmem:[%s0 + $0x8] sm:$0xff]
  %v34 = vld [vmem:[%s0 + $0x10] sm:$0xff]
  %v35 = vld [vmem:[%s0 + $0x18] sm:$0xff]
  %v36 = vld [vmem:[%s0 + $0x20] sm:$0xff]
  %v37 = vld [vmem:[%s0 + $0x28] sm:$0xff]
  %v38 = vld [vmem:[%s0 + $0x30] sm:$0xff]
  %v39 = vld [vmem:[%s0 + $0x38] sm:$0xff]
  %v40 = vld [vmem:[%s0 + $0x40] sm:$0xff]
  %v41 = vld [vmem:[%s0 + $0x48] sm:$0xff]
  %v42 = vld [vmem:[%s0 + $0x50] sm:$0xff]
  %v43 = vld [vmem:[%s0 + $0x58] sm:$0xff]
  %v44 = vld [vmem:[%s0 + $0x60] sm:$0xff]
  %v45 = vld [vmem:[%s0 + $0x68] sm:$0xff]
  %v46 = vld [vmem:[%s0 + $0x70] sm:$0xff]
  %v47 = vld [vmem:[%s0 + $0x78] sm:$0xff]
  %v48 = vld [vmem:[%s0 + $0x80] sm:$0xff]
  %v49 = vld [vmem:[%s0 + $0x88] sm:$0xff]
  %v50 = vld [vmem:[%s0 + $0x90] sm:$0xff]
  %v51 = vld [vmem:[%s0 + $0x98] sm:$0xff]
  %v52 = vld [vmem:[%s0 + $0xa0] sm:$0xff]
  %v53 = vld [vmem:[%s0 + $0xa8] sm:$0xff]
  %v54 = vld [vmem:[%s0 + $0xb0] sm:$0xff]
  %v55 = vld [vmem:[%s0 + $0xb8] sm:$0xff]
  %v56 = vld [vmem:[%s0 + $0xc0] sm:$0xff]
  %v57 = vld [vmem:[%s0 + $0xc8] sm:$0xff]
  %v58 = vld [vmem:[%s0 + $0xd0] sm:$0xff]
  %v59 = vld [vmem:[%s0 + $0xd8] sm:$0xff]
  %v60 = vld [vmem:[%s0 + $0xe0] sm:$0xff]
  %v61 = vld [vmem:[%s0 + $0xe8] sm:$0xff]
  %v62 = vld [vmem:[%s0 + $0xf0] sm:$0xff]
  %v63 = vld [vmem:[%s0 + $0xf8] sm:$0xff]
  %v64 = vpack.c.bf16 %v33, %v32
  %v65 = vpack.c.bf16 %v35, %v34
  %v66 = vpack.c.bf16 %v37, %v36
  %v67 = vpack.c.bf16 %v39, %v38
  %v68 = vpack.c.bf16 %v41, %v40
  %v69 = vpack.c.bf16 %v43, %v42
  %v70 = vpack.c.bf16 %v45, %v44
  %v71 = vpack.c.bf16 %v47, %v46
  %v72 = vpack.c.bf16 %v49, %v48
  %v73 = vpack.c.bf16 %v51, %v50
  %v74 = vpack.c.bf16 %v53, %v52
  %v75 = vpack.c.bf16 %v55, %v54
  %v76 = vpack.c.bf16 %v57, %v56
  %v77 = vpack.c.bf16 %v59, %v58
  %v78 = vpack.c.bf16 %v61, %v60
  %v79 = vpack.c.bf16 %v63, %v62
  %v80 = vld [vmem:[%s2] sm:$0xf]
  %v81 = vld [vmem:[%s2 + $0x4] sm:$0xf]
  %v82 = vld [vmem:[%s3] sm:$0x1]
  %v84 = vperm.slane %v82, 0
  %v88 = vunpack.c.l.b16 %v80
  %v89 = vunpack.c.l.b16 %v81
  %v90 = vpack.c.b16 %v89, %v88
  %vm92 = vcmask 130048
  %v94 = vsel %vm92, %v64, 0
  %v97 = vsel %vm92, %v65, 0
  %v100 = vsel %vm92, %v66, 0
  %v103 = vsel %vm92, %v67, 0
  %v106 = vsel %vm92, %v68, 0
  %v109 = vsel %vm92, %v69, 0
  %v112 = vsel %vm92, %v70, 0
  %v115 = vsel %vm92, %v71, 0
  %v118 = vsel %vm92, %v72, 0
  %v121 = vsel %vm92, %v73, 0
  %v124 = vsel %vm92, %v74, 0
  %v127 = vsel %vm92, %v75, 0
  %v130 = vsel %vm92, %v76, 0
  %v133 = vsel %vm92, %v77, 0
  %v136 = vsel %vm92, %v78, 0
  %v139 = vsel %vm92, %v79, 0
  %141 = vmatpush.bf16.msra.mxu0 0
  %142 = vmatpush.bf16.msra.mxu0 0
  %143 = vmatpush.bf16.msra.mxu0 0
  %144 = vmatpush.bf16.msra.mxu0 0
  %145 = vmatpush.bf16.msra.mxu0 0
  %146 = vmatpush.bf16.msra.mxu0 0
  %147 = vmatpush.bf16.msra.mxu0 0
  %148 = vmatpush.bf16.msra.mxu0 %v90
  %149 = vmatmul.bf16.gmra.mxu0 %v94
  %v150 = vpop.f32.mrf.mxu0
  %v151 = vadd.f32 %v84, %v150
  %v152 = vpop.f32.mrf.mxu0
  %v153 = vadd.f32 %v84, %v152
  %154 = vmatmul.bf16.gmra.mxu0 %v97
  %v155 = vpop.f32.mrf.mxu0
  %v156 = vadd.f32 %v84, %v155
  %v157 = vpop.f32.mrf.mxu0
  %v158 = vadd.f32 %v84, %v157
  %159 = vmatmul.bf16.gmra.mxu0 %v100
  %v160 = vpop.f32.mrf.mxu0
  %v161 = vadd.f32 %v84, %v160
  %v162 = vpop.f32.mrf.mxu0
  %v163 = vadd.f32 %v84, %v162
  %164 = vmatmul.bf16.gmra.mxu0 %v103
  %v165 = vpop.f32.mrf.mxu0
  %v166 = vadd.f32 %v84, %v165
  %v167 = vpop.f32.mrf.mxu0
  %v168 = vadd.f32 %v84, %v167
  %169 = vmatmul.bf16.gmra.mxu0 %v106
  %v170 = vpop.f32.mrf.mxu0
  %v171 = vadd.f32 %v84, %v170
  %v172 = vpop.f32.mrf.mxu0
  %v173 = vadd.f32 %v84, %v172
  %174 = vmatmul.bf16.gmra.mxu0 %v109
  %v175 = vpop.f32.mrf.mxu0
  %v176 = vadd.f32 %v84, %v175
  %v177 = vpop.f32.mrf.mxu0
  %v178 = vadd.f32 %v84, %v177
  %179 = vmatmul.bf16.gmra.mxu0 %v112
  %v180 = vpop.f32.mrf.mxu0
  %v181 = vadd.f32 %v84, %v180
  %v182 = vpop.f32.mrf.mxu0
  %v183 = vadd.f32 %v84, %v182
  %184 = vmatmul.bf16.gmra.mxu0 %v115
  %v185 = vpop.f32.mrf.mxu0
  %v186 = vadd.f32 %v84, %v185
  %v187 = vpop.f32.mrf.mxu0
  %v188 = vadd.f32 %v84, %v187
  %189 = vmatmul.bf16.gmra.mxu0 %v118
  %v190 = vpop.f32.mrf.mxu0
  %v191 = vadd.f32 %v84, %v190
  %v192 = vpop.f32.mrf.mxu0
  %v193 = vadd.f32 %v84, %v192
  %194 = vmatmul.bf16.gmra.mxu0 %v121
  %v195 = vpop.f32.mrf.mxu0
  %v196 = vadd.f32 %v84, %v195
  %v197 = vpop.f32.mrf.mxu0
  %v198 = vadd.f32 %v84, %v197
  %199 = vmatmul.bf16.gmra.mxu0 %v124
  %v200 = vpop.f32.mrf.mxu0
  %v201 = vadd.f32 %v84, %v200
  %v202 = vpop.f32.mrf.mxu0
  %v203 = vadd.f32 %v84, %v202
  %204 = vmatmul.bf16.gmra.mxu0 %v127
  %v205 = vpop.f32.mrf.mxu0
  %v206 = vadd.f32 %v84, %v205
  %v207 = vpop.f32.mrf.mxu0
  %v208 = vadd.f32 %v84, %v207
  %209 = vmatmul.bf16.gmra.mxu0 %v130
  %v210 = vpop.f32.mrf.mxu0
  %v211 = vadd.f32 %v84, %v210
  %v212 = vpop.f32.mrf.mxu0
  %v213 = vadd.f32 %v84, %v212
  %214 = vmatmul.bf16.gmra.mxu0 %v133
  %v215 = vpop.f32.mrf.mxu0
  %v216 = vadd.f32 %v84, %v215
  %v217 = vpop.f32.mrf.mxu0
  %v218 = vadd.f32 %v84, %v217
  %219 = vmatmul.bf16.gmra.mxu0 %v136
  %v220 = vpop.f32.mrf.mxu0
  %v221 = vadd.f32 %v84, %v220
  %v222 = vpop.f32.mrf.mxu0
  %v223 = vadd.f32 %v84, %v222
  %224 = vmatmul.bf16.gmra.mxu0 %v139
  %v225 = vpop.f32.mrf.mxu0
  %v226 = vadd.f32 %v84, %v225
  %v227 = vpop.f32.mrf.mxu0
  %v228 = vadd.f32 %v84, %v227
  %229 = vdwg.mxu0
  %230 = vrot.lane.b32.xlu0 %v151, 64
  %v231 = vpop.permute.xlu0 %230
  %232 = vrot.lane.b32.xlu0 %v153, 64
  %v233 = vpop.permute.xlu0 %232
  %234 = vrot.lane.b32.xlu0 %v156, 64
  %v235 = vpop.permute.xlu0 %234
  %236 = vrot.lane.b32.xlu0 %v158, 64
  %v237 = vpop.permute.xlu0 %236
  %238 = vrot.lane.b32.xlu0 %v161, 64
  %v239 = vpop.permute.xlu0 %238
  %240 = vrot.lane.b32.xlu0 %v163, 64
  %v241 = vpop.permute.xlu0 %240
  %242 = vrot.lane.b32.xlu0 %v166, 64
  %v243 = vpop.permute.xlu0 %242
  %244 = vrot.lane.b32.xlu0 %v168, 64
  %v245 = vpop.permute.xlu0 %244
  %246 = vrot.lane.b32.xlu0 %v171, 64
  %v247 = vpop.permute.xlu0 %246
  %248 = vrot.lane.b32.xlu0 %v173, 64
  %v249 = vpop.permute.xlu0 %248
  %250 = vrot.lane.b32.xlu0 %v176, 64
  %v251 = vpop.permute.xlu0 %250
  %252 = vrot.lane.b32.xlu0 %v178, 64
  %v253 = vpop.permute.xlu0 %252
  %254 = vrot.lane.b32.xlu0 %v181, 64
  %v255 = vpop.permute.xlu0 %254
  %256 = vrot.lane.b32.xlu0 %v183, 64
  %v257 = vpop.permute.xlu0 %256
  %258 = vrot.lane.b32.xlu0 %v186, 64
  %v259 = vpop.permute.xlu0 %258
  %260 = vrot.lane.b32.xlu0 %v188, 64
  %v261 = vpop.permute.xlu0 %260
  %262 = vrot.lane.b32.xlu0 %v191, 64
  %v263 = vpop.permute.xlu0 %262
  %264 = vrot.lane.b32.xlu0 %v193, 64
  %v265 = vpop.permute.xlu0 %264
  %266 = vrot.lane.b32.xlu0 %v196, 64
  %v267 = vpop.permute.xlu0 %266
  %268 = vrot.lane.b32.xlu0 %v198, 64
  %v269 = vpop.permute.xlu0 %268
  %270 = vrot.lane.b32.xlu0 %v201, 64
  %v271 = vpop.permute.xlu0 %270
  %272 = vrot.lane.b32.xlu0 %v203, 64
  %v273 = vpop.permute.xlu0 %272
  %274 = vrot.lane.b32.xlu0 %v206, 64
  %v275 = vpop.permute.xlu0 %274
  %276 = vrot.lane.b32.xlu0 %v208, 64
  %v277 = vpop.permute.xlu0 %276
  %278 = vrot.lane.b32.xlu0 %v211, 64
  %v279 = vpop.permute.xlu0 %278
  %280 = vrot.lane.b32.xlu0 %v213, 64
  %v281 = vpop.permute.xlu0 %280
  %282 = vrot.lane.b32.xlu0 %v216, 64
  %v283 = vpop.permute.xlu0 %282
  %284 = vrot.lane.b32.xlu0 %v218, 64
  %v285 = vpop.permute.xlu0 %284
  %286 = vrot.lane.b32.xlu0 %v221, 64
  %v287 = vpop.permute.xlu0 %286
  %288 = vrot.lane.b32.xlu0 %v223, 64
  %v289 = vpop.permute.xlu0 %288
  %290 = vrot.lane.b32.xlu0 %v226, 64
  %v291 = vpop.permute.xlu0 %290
  %292 = vrot.lane.b32.xlu0 %v228, 64
  %v293 = vpop.permute.xlu0 %292
  %v294 = vmax.f32 %v151, %v231
  %v295 = vmax.f32 %v153, %v233
  %v296 = vmax.f32 %v156, %v235
  %v297 = vmax.f32 %v158, %v237
  %v298 = vmax.f32 %v161, %v239
  %v299 = vmax.f32 %v163, %v241
  %v300 = vmax.f32 %v166, %v243
  %v301 = vmax.f32 %v168, %v245
  %v302 = vmax.f32 %v171, %v247
  %v303 = vmax.f32 %v173, %v249
  %v304 = vmax.f32 %v176, %v251
  %v305 = vmax.f32 %v178, %v253
  %v306 = vmax.f32 %v181, %v255
  %v307 = vmax.f32 %v183, %v257
  %v308 = vmax.f32 %v186, %v259
  %v309 = vmax.f32 %v188, %v261
  %v310 = vmax.f32 %v191, %v263
  %v311 = vmax.f32 %v193, %v265
  %v312 = vmax.f32 %v196, %v267
  %v313 = vmax.f32 %v198, %v269
  %v314 = vmax.f32 %v201, %v271
  %v315 = vmax.f32 %v203, %v273
  %v316 = vmax.f32 %v206, %v275
  %v317 = vmax.f32 %v208, %v277
  %v318 = vmax.f32 %v211, %v279
  %v319 = vmax.f32 %v213, %v281
  %v320 = vmax.f32 %v216, %v283
  %v321 = vmax.f32 %v218, %v285
  %v322 = vmax.f32 %v221, %v287
  %v323 = vmax.f32 %v223, %v289
  %v324 = vmax.f32 %v226, %v291
  %v325 = vmax.f32 %v228, %v293
  %326 = vrot.lane.b32.xlu0 %v294, 32
  %v327 = vpop.permute.xlu0 %326
  %328 = vrot.lane.b32.xlu0 %v295, 32
  %v329 = vpop.permute.xlu0 %328
  %330 = vrot.lane.b32.xlu0 %v296, 32
  %v331 = vpop.permute.xlu0 %330
  %332 = vrot.lane.b32.xlu0 %v297, 32
  %v333 = vpop.permute.xlu0 %332
  %334 = vrot.lane.b32.xlu0 %v298, 32
  %v335 = vpop.permute.xlu0 %334
  %336 = vrot.lane.b32.xlu0 %v299, 32
  %v337 = vpop.permute.xlu0 %336
  %338 = vrot.lane.b32.xlu0 %v300, 32
  %v339 = vpop.permute.xlu0 %338
  %340 = vrot.lane.b32.xlu0 %v301, 32
  %v341 = vpop.permute.xlu0 %340
  %342 = vrot.lane.b32.xlu0 %v302, 32
  %v343 = vpop.permute.xlu0 %342
  %344 = vrot.lane.b32.xlu0 %v303, 32
  %v345 = vpop.permute.xlu0 %344
  %346 = vrot.lane.b32.xlu0 %v304, 32
  %v347 = vpop.permute.xlu0 %346
  %348 = vrot.lane.b32.xlu0 %v305, 32
  %v349 = vpop.permute.xlu0 %348
  %350 = vrot.lane.b32.xlu0 %v306, 32
  %v351 = vpop.permute.xlu0 %350
  %352 = vrot.lane.b32.xlu0 %v307, 32
  %v353 = vpop.permute.xlu0 %352
  %354 = vrot.lane.b32.xlu0 %v308, 32
  %v355 = vpop.permute.xlu0 %354
  %356 = vrot.lane.b32.xlu0 %v309, 32
  %v357 = vpop.permute.xlu0 %356
  %358 = vrot.lane.b32.xlu0 %v310, 32
  %v359 = vpop.permute.xlu0 %358
  %360 = vrot.lane.b32.xlu0 %v311, 32
  %v361 = vpop.permute.xlu0 %360
  %362 = vrot.lane.b32.xlu0 %v312, 32
  %v363 = vpop.permute.xlu0 %362
  %364 = vrot.lane.b32.xlu0 %v313, 32
  %v365 = vpop.permute.xlu0 %364
  %366 = vrot.lane.b32.xlu0 %v314, 32
  %v367 = vpop.permute.xlu0 %366
  %368 = vrot.lane.b32.xlu0 %v315, 32
  %v369 = vpop.permute.xlu0 %368
  %370 = vrot.lane.b32.xlu0 %v316, 32
  %v371 = vpop.permute.xlu0 %370
  %372 = vrot.lane.b32.xlu0 %v317, 32
  %v373 = vpop.permute.xlu0 %372
  %374 = vrot.lane.b32.xlu0 %v318, 32
  %v375 = vpop.permute.xlu0 %374
  %376 = vrot.lane.b32.xlu0 %v319, 32
  %v377 = vpop.permute.xlu0 %376
  %378 = vrot.lane.b32.xlu0 %v320, 32
  %v379 = vpop.permute.xlu0 %378
  %380 = vrot.lane.b32.xlu0 %v321, 32
  %v381 = vpop.permute.xlu0 %380
  %382 = vrot.lane.b32.xlu0 %v322, 32
  %v383 = vpop.permute.xlu0 %382
  %384 = vrot.lane.b32.xlu0 %v323, 32
  %v385 = vpop.permute.xlu0 %384
  %386 = vrot.lane.b32.xlu0 %v324, 32
  %v387 = vpop.permute.xlu0 %386
  %388 = vrot.lane.b32.xlu0 %v325, 32
  %v389 = vpop.permute.xlu0 %388
  %v390 = vmax.f32 %v294, %v327
  %v391 = vmax.f32 %v295, %v329
  %v392 = vmax.f32 %v296, %v331
  %v393 = vmax.f32 %v297, %v333
  %v394 = vmax.f32 %v298, %v335
  %v395 = vmax.f32 %v299, %v337
  %v396 = vmax.f32 %v300, %v339
  %v397 = vmax.f32 %v301, %v341
  %v398 = vmax.f32 %v302, %v343
  %v399 = vmax.f32 %v303, %v345
  %v400 = vmax.f32 %v304, %v347
  %v401 = vmax.f32 %v305, %v349
  %v402 = vmax.f32 %v306, %v351
  %v403 = vmax.f32 %v307, %v353
  %v404 = vmax.f32 %v308, %v355
  %v405 = vmax.f32 %v309, %v357
  %v406 = vmax.f32 %v310, %v359
  %v407 = vmax.f32 %v311, %v361
  %v408 = vmax.f32 %v312, %v363
  %v409 = vmax.f32 %v313, %v365
  %v410 = vmax.f32 %v314, %v367
  %v411 = vmax.f32 %v315, %v369
  %v412 = vmax.f32 %v316, %v371
  %v413 = vmax.f32 %v317, %v373
  %v414 = vmax.f32 %v318, %v375
  %v415 = vmax.f32 %v319, %v377
  %v416 = vmax.f32 %v320, %v379
  %v417 = vmax.f32 %v321, %v381
  %v418 = vmax.f32 %v322, %v383
  %v419 = vmax.f32 %v323, %v385
  %v420 = vmax.f32 %v324, %v387
  %v421 = vmax.f32 %v325, %v389
  %v422 = vmax.f32 %v390, 0.0
  %v423 = vmax.f32 %v391, 0.0
  %v424 = vmax.f32 %v392, 0.0
  %v425 = vmax.f32 %v393, 0.0
  %v426 = vmax.f32 %v394, 0.0
  %v427 = vmax.f32 %v395, 0.0
  %v428 = vmax.f32 %v396, 0.0
  %v429 = vmax.f32 %v397, 0.0
  %v430 = vmax.f32 %v398, 0.0
  %v431 = vmax.f32 %v399, 0.0
  %v432 = vmax.f32 %v400, 0.0
  %v433 = vmax.f32 %v401, 0.0
  %v434 = vmax.f32 %v402, 0.0
  %v435 = vmax.f32 %v403, 0.0
  %v436 = vmax.f32 %v404, 0.0
  %v437 = vmax.f32 %v405, 0.0
  %v438 = vmax.f32 %v406, 0.0
  %v439 = vmax.f32 %v407, 0.0
  %v440 = vmax.f32 %v408, 0.0
  %v441 = vmax.f32 %v409, 0.0
  %v442 = vmax.f32 %v410, 0.0
  %v443 = vmax.f32 %v411, 0.0
  %v444 = vmax.f32 %v412, 0.0
  %v445 = vmax.f32 %v413, 0.0
  %v446 = vmax.f32 %v414, 0.0
  %v447 = vmax.f32 %v415, 0.0
  %v448 = vmax.f32 %v416, 0.0
  %v449 = vmax.f32 %v417, 0.0
  %v450 = vmax.f32 %v418, 0.0
  %v451 = vmax.f32 %v419, 0.0
  %v452 = vmax.f32 %v420, 0.0
  %v453 = vmax.f32 %v421, 0.0
  %v454 = vpack.c.bf16 %v423, %v422
  %v455 = vpack.c.bf16 %v425, %v424
  %v456 = vpack.c.bf16 %v427, %v426
  %v457 = vpack.c.bf16 %v429, %v428
  %v458 = vpack.c.bf16 %v431, %v430
  %v459 = vpack.c.bf16 %v433, %v432
  %v460 = vpack.c.bf16 %v435, %v434
  %v461 = vpack.c.bf16 %v437, %v436
  %v462 = vpack.c.bf16 %v439, %v438
  %v463 = vpack.c.bf16 %v441, %v440
  %v464 = vpack.c.bf16 %v443, %v442
  %v465 = vpack.c.bf16 %v445, %v444
  %v466 = vpack.c.bf16 %v447, %v446
  %v467 = vpack.c.bf16 %v449, %v448
  %v468 = vpack.c.bf16 %v451, %v450
  %v469 = vpack.c.bf16 %v453, %v452
  %v470 = vld [vmem:[%s4] sm:$0xf]
  %v471 = vld [vmem:[%s4 + $0x4] sm:$0xf]
  %v472 = vld [vmem:[%s4 + $0x8] sm:$0xf]
  %v473 = vld [vmem:[%s4 + $0xc] sm:$0xf]
  %v474 = vld [vmem:[%s5] sm:$0x1]
  %v476 = vperm.slane %v474, 0
  %v482 = vunpack.c.l.b16 %v470
  %v483 = vunpack.c.l.b16 %v471
  %v484 = vunpack.c.l.b16 %v472
  %v485 = vunpack.c.l.b16 %v473
  %v486 = vpack.c.b16 %v483, %v482
  %v487 = vpack.c.b16 %v485, %v484
  %vm490 = vcmask 261120
  %v492 = vsel %vm490, %v454, 0
  %v495 = vsel %vm490, %v455, 0
  %v498 = vsel %vm490, %v456, 0
  %v501 = vsel %vm490, %v457, 0
  %v504 = vsel %vm490, %v458, 0
  %v507 = vsel %vm490, %v459, 0
  %v510 = vsel %vm490, %v460, 0
  %v513 = vsel %vm490, %v461, 0
  %v516 = vsel %vm490, %v462, 0
  %v519 = vsel %vm490, %v463, 0
  %v522 = vsel %vm490, %v464, 0
  %v525 = vsel %vm490, %v465, 0
  %v528 = vsel %vm490, %v466, 0
  %v531 = vsel %vm490, %v467, 0
  %v534 = vsel %vm490, %v468, 0
  %v537 = vsel %vm490, %v469, 0
  %539 = vmatpush.bf16.msra.mxu0 0
  %540 = vmatpush.bf16.msra.mxu0 0
  %541 = vmatpush.bf16.msra.mxu0 0
  %542 = vmatpush.bf16.msra.mxu0 0
  %543 = vmatpush.bf16.msra.mxu0 0
  %544 = vmatpush.bf16.msra.mxu0 0
  %545 = vmatpush.bf16.msra.mxu0 %v487
  %546 = vmatpush.bf16.msra.mxu0 %v486
  %547 = vmatmul.bf16.gmra.mxu0 %v492
  %v548 = vpop.f32.mrf.mxu0
  %v549 = vadd.f32 %v476, %v548
  %v550 = vpop.f32.mrf.mxu0
  %v551 = vadd.f32 %v476, %v550
  %552 = vmatmul.bf16.gmra.mxu0 %v495
  %v553 = vpop.f32.mrf.mxu0
  %v554 = vadd.f32 %v476, %v553
  %v555 = vpop.f32.mrf.mxu0
  %v556 = vadd.f32 %v476, %v555
  %557 = vmatmul.bf16.gmra.mxu0 %v498
  %v558 = vpop.f32.mrf.mxu0
  %v559 = vadd.f32 %v476, %v558
  %v560 = vpop.f32.mrf.mxu0
  %v561 = vadd.f32 %v476, %v560
  %562 = vmatmul.bf16.gmra.mxu0 %v501
  %v563 = vpop.f32.mrf.mxu0
  %v564 = vadd.f32 %v476, %v563
  %v565 = vpop.f32.mrf.mxu0
  %v566 = vadd.f32 %v476, %v565
  %567 = vmatmul.bf16.gmra.mxu0 %v504
  %v568 = vpop.f32.mrf.mxu0
  %v569 = vadd.f32 %v476, %v568
  %v570 = vpop.f32.mrf.mxu0
  %v571 = vadd.f32 %v476, %v570
  %572 = vmatmul.bf16.gmra.mxu0 %v507
  %v573 = vpop.f32.mrf.mxu0
  %v574 = vadd.f32 %v476, %v573
  %v575 = vpop.f32.mrf.mxu0
  %v576 = vadd.f32 %v476, %v575
  %577 = vmatmul.bf16.gmra.mxu0 %v510
  %v578 = vpop.f32.mrf.mxu0
  %v579 = vadd.f32 %v476, %v578
  %v580 = vpop.f32.mrf.mxu0
  %v581 = vadd.f32 %v476, %v580
  %582 = vmatmul.bf16.gmra.mxu0 %v513
  %v583 = vpop.f32.mrf.mxu0
  %v584 = vadd.f32 %v476, %v583
  %v585 = vpop.f32.mrf.mxu0
  %v586 = vadd.f32 %v476, %v585
  %587 = vmatmul.bf16.gmra.mxu0 %v516
  %v588 = vpop.f32.mrf.mxu0
  %v589 = vadd.f32 %v476, %v588
  %v590 = vpop.f32.mrf.mxu0
  %v591 = vadd.f32 %v476, %v590
  %592 = vmatmul.bf16.gmra.mxu0 %v519
  %v593 = vpop.f32.mrf.mxu0
  %v594 = vadd.f32 %v476, %v593
  %v595 = vpop.f32.mrf.mxu0
  %v596 = vadd.f32 %v476, %v595
  %597 = vmatmul.bf16.gmra.mxu0 %v522
  %v598 = vpop.f32.mrf.mxu0
  %v599 = vadd.f32 %v476, %v598
  %v600 = vpop.f32.mrf.mxu0
  %v601 = vadd.f32 %v476, %v600
  %602 = vmatmul.bf16.gmra.mxu0 %v525
  %v603 = vpop.f32.mrf.mxu0
  %v604 = vadd.f32 %v476, %v603
  %v605 = vpop.f32.mrf.mxu0
  %v606 = vadd.f32 %v476, %v605
  %607 = vmatmul.bf16.gmra.mxu0 %v528
  %v608 = vpop.f32.mrf.mxu0
  %v609 = vadd.f32 %v476, %v608
  %v610 = vpop.f32.mrf.mxu0
  %v611 = vadd.f32 %v476, %v610
  %612 = vmatmul.bf16.gmra.mxu0 %v531
  %v613 = vpop.f32.mrf.mxu0
  %v614 = vadd.f32 %v476, %v613
  %v615 = vpop.f32.mrf.mxu0
  %v616 = vadd.f32 %v476, %v615
  %617 = vmatmul.bf16.gmra.mxu0 %v534
  %v618 = vpop.f32.mrf.mxu0
  %v619 = vadd.f32 %v476, %v618
  %v620 = vpop.f32.mrf.mxu0
  %v621 = vadd.f32 %v476, %v620
  %622 = vmatmul.bf16.gmra.mxu0 %v537
  %v623 = vpop.f32.mrf.mxu0
  %v624 = vadd.f32 %v476, %v623
  %v625 = vpop.f32.mrf.mxu0
  %v626 = vadd.f32 %v476, %v625
  %627 = vdwg.mxu0
  %628 = vrot.lane.b32.xlu0 %v549, 64
  %v629 = vpop.permute.xlu0 %628
  %630 = vrot.lane.b32.xlu0 %v551, 64
  %v631 = vpop.permute.xlu0 %630
  %632 = vrot.lane.b32.xlu0 %v554, 64
  %v633 = vpop.permute.xlu0 %632
  %634 = vrot.lane.b32.xlu0 %v556, 64
  %v635 = vpop.permute.xlu0 %634
  %636 = vrot.lane.b32.xlu0 %v559, 64
  %v637 = vpop.permute.xlu0 %636
  %638 = vrot.lane.b32.xlu0 %v561, 64
  %v639 = vpop.permute.xlu0 %638
  %640 = vrot.lane.b32.xlu0 %v564, 64
  %v641 = vpop.permute.xlu0 %640
  %642 = vrot.lane.b32.xlu0 %v566, 64
  %v643 = vpop.permute.xlu0 %642
  %644 = vrot.lane.b32.xlu0 %v569, 64
  %v645 = vpop.permute.xlu0 %644
  %646 = vrot.lane.b32.xlu0 %v571, 64
  %v647 = vpop.permute.xlu0 %646
  %648 = vrot.lane.b32.xlu0 %v574, 64
  %v649 = vpop.permute.xlu0 %648
  %650 = vrot.lane.b32.xlu0 %v576, 64
  %v651 = vpop.permute.xlu0 %650
  %652 = vrot.lane.b32.xlu0 %v579, 64
  %v653 = vpop.permute.xlu0 %652
  %654 = vrot.lane.b32.xlu0 %v581, 64
  %v655 = vpop.permute.xlu0 %654
  %656 = vrot.lane.b32.xlu0 %v584, 64
  %v657 = vpop.permute.xlu0 %656
  %658 = vrot.lane.b32.xlu0 %v586, 64
  %v659 = vpop.permute.xlu0 %658
  %660 = vrot.lane.b32.xlu0 %v589, 64
  %v661 = vpop.permute.xlu0 %660
  %662 = vrot.lane.b32.xlu0 %v591, 64
  %v663 = vpop.permute.xlu0 %662
  %664 = vrot.lane.b32.xlu0 %v594, 64
  %v665 = vpop.permute.xlu0 %664
  %666 = vrot.lane.b32.xlu0 %v596, 64
  %v667 = vpop.permute.xlu0 %666
  %668 = vrot.lane.b32.xlu0 %v599, 64
  %v669 = vpop.permute.xlu0 %668
  %670 = vrot.lane.b32.xlu0 %v601, 64
  %v671 = vpop.permute.xlu0 %670
  %672 = vrot.lane.b32.xlu0 %v604, 64
  %v673 = vpop.permute.xlu0 %672
  %674 = vrot.lane.b32.xlu0 %v606, 64
  %v675 = vpop.permute.xlu0 %674
  %676 = vrot.lane.b32.xlu0 %v609, 64
  %v677 = vpop.permute.xlu0 %676
  %678 = vrot.lane.b32.xlu0 %v611, 64
  %v679 = vpop.permute.xlu0 %678
  %680 = vrot.lane.b32.xlu0 %v614, 64
  %v681 = vpop.permute.xlu0 %680
  %682 = vrot.lane.b32.xlu0 %v616, 64
  %v683 = vpop.permute.xlu0 %682
  %684 = vrot.lane.b32.xlu0 %v619, 64
  %v685 = vpop.permute.xlu0 %684
  %686 = vrot.lane.b32.xlu0 %v621, 64
  %v687 = vpop.permute.xlu0 %686
  %688 = vrot.lane.b32.xlu0 %v624, 64
  %v689 = vpop.permute.xlu0 %688
  %690 = vrot.lane.b32.xlu0 %v626, 64
  %v691 = vpop.permute.xlu0 %690
  %v692 = vmax.f32 %v549, %v629
  %v693 = vmax.f32 %v551, %v631
  %v694 = vmax.f32 %v554, %v633
  %v695 = vmax.f32 %v556, %v635
  %v696 = vmax.f32 %v559, %v637
  %v697 = vmax.f32 %v561, %v639
  %v698 = vmax.f32 %v564, %v641
  %v699 = vmax.f32 %v566, %v643
  %v700 = vmax.f32 %v569, %v645
  %v701 = vmax.f32 %v571, %v647
  %v702 = vmax.f32 %v574, %v649
  %v703 = vmax.f32 %v576, %v651
  %v704 = vmax.f32 %v579, %v653
  %v705 = vmax.f32 %v581, %v655
  %v706 = vmax.f32 %v584, %v657
  %v707 = vmax.f32 %v586, %v659
  %v708 = vmax.f32 %v589, %v661
  %v709 = vmax.f32 %v591, %v663
  %v710 = vmax.f32 %v594, %v665
  %v711 = vmax.f32 %v596, %v667
  %v712 = vmax.f32 %v599, %v669
  %v713 = vmax.f32 %v601, %v671
  %v714 = vmax.f32 %v604, %v673
  %v715 = vmax.f32 %v606, %v675
  %v716 = vmax.f32 %v609, %v677
  %v717 = vmax.f32 %v611, %v679
  %v718 = vmax.f32 %v614, %v681
  %v719 = vmax.f32 %v616, %v683
  %v720 = vmax.f32 %v619, %v685
  %v721 = vmax.f32 %v621, %v687
  %v722 = vmax.f32 %v624, %v689
  %v723 = vmax.f32 %v626, %v691
  %724 = vrot.lane.b32.xlu0 %v692, 32
  %v725 = vpop.permute.xlu0 %724
  %726 = vrot.lane.b32.xlu0 %v693, 32
  %v727 = vpop.permute.xlu0 %726
  %728 = vrot.lane.b32.xlu0 %v694, 32
  %v729 = vpop.permute.xlu0 %728
  %730 = vrot.lane.b32.xlu0 %v695, 32
  %v731 = vpop.permute.xlu0 %730
  %732 = vrot.lane.b32.xlu0 %v696, 32
  %v733 = vpop.permute.xlu0 %732
  %734 = vrot.lane.b32.xlu0 %v697, 32
  %v735 = vpop.permute.xlu0 %734
  %736 = vrot.lane.b32.xlu0 %v698, 32
  %v737 = vpop.permute.xlu0 %736
  %738 = vrot.lane.b32.xlu0 %v699, 32
  %v739 = vpop.permute.xlu0 %738
  %740 = vrot.lane.b32.xlu0 %v700, 32
  %v741 = vpop.permute.xlu0 %740
  %742 = vrot.lane.b32.xlu0 %v701, 32
  %v743 = vpop.permute.xlu0 %742
  %744 = vrot.lane.b32.xlu0 %v702, 32
  %v745 = vpop.permute.xlu0 %744
  %746 = vrot.lane.b32.xlu0 %v703, 32
  %v747 = vpop.permute.xlu0 %746
  %748 = vrot.lane.b32.xlu0 %v704, 32
  %v749 = vpop.permute.xlu0 %748
  %750 = vrot.lane.b32.xlu0 %v705, 32
  %v751 = vpop.permute.xlu0 %750
  %752 = vrot.lane.b32.xlu0 %v706, 32
  %v753 = vpop.permute.xlu0 %752
  %754 = vrot.lane.b32.xlu0 %v707, 32
  %v755 = vpop.permute.xlu0 %754
  %756 = vrot.lane.b32.xlu0 %v708, 32
  %v757 = vpop.permute.xlu0 %756
  %758 = vrot.lane.b32.xlu0 %v709, 32
  %v759 = vpop.permute.xlu0 %758
  %760 = vrot.lane.b32.xlu0 %v710, 32
  %v761 = vpop.permute.xlu0 %760
  %762 = vrot.lane.b32.xlu0 %v711, 32
  %v763 = vpop.permute.xlu0 %762
  %764 = vrot.lane.b32.xlu0 %v712, 32
  %v765 = vpop.permute.xlu0 %764
  %766 = vrot.lane.b32.xlu0 %v713, 32
  %v767 = vpop.permute.xlu0 %766
  %768 = vrot.lane.b32.xlu0 %v714, 32
  %v769 = vpop.permute.xlu0 %768
  %770 = vrot.lane.b32.xlu0 %v715, 32
  %v771 = vpop.permute.xlu0 %770
  %772 = vrot.lane.b32.xlu0 %v716, 32
  %v773 = vpop.permute.xlu0 %772
  %774 = vrot.lane.b32.xlu0 %v717, 32
  %v775 = vpop.permute.xlu0 %774
  %776 = vrot.lane.b32.xlu0 %v718, 32
  %v777 = vpop.permute.xlu0 %776
  %778 = vrot.lane.b32.xlu0 %v719, 32
  %v779 = vpop.permute.xlu0 %778
  %780 = vrot.lane.b32.xlu0 %v720, 32
  %v781 = vpop.permute.xlu0 %780
  %782 = vrot.lane.b32.xlu0 %v721, 32
  %v783 = vpop.permute.xlu0 %782
  %784 = vrot.lane.b32.xlu0 %v722, 32
  %v785 = vpop.permute.xlu0 %784
  %786 = vrot.lane.b32.xlu0 %v723, 32
  %v787 = vpop.permute.xlu0 %786
  %v788 = vmax.f32 %v692, %v725
  %v789 = vmax.f32 %v693, %v727
  %v790 = vmax.f32 %v694, %v729
  %v791 = vmax.f32 %v695, %v731
  %v792 = vmax.f32 %v696, %v733
  %v793 = vmax.f32 %v697, %v735
  %v794 = vmax.f32 %v698, %v737
  %v795 = vmax.f32 %v699, %v739
  %v796 = vmax.f32 %v700, %v741
  %v797 = vmax.f32 %v701, %v743
  %v798 = vmax.f32 %v702, %v745
  %v799 = vmax.f32 %v703, %v747
  %v800 = vmax.f32 %v704, %v749
  %v801 = vmax.f32 %v705, %v751
  %v802 = vmax.f32 %v706, %v753
  %v803 = vmax.f32 %v707, %v755
  %v804 = vmax.f32 %v708, %v757
  %v805 = vmax.f32 %v709, %v759
  %v806 = vmax.f32 %v710, %v761
  %v807 = vmax.f32 %v711, %v763
  %v808 = vmax.f32 %v712, %v765
  %v809 = vmax.f32 %v713, %v767
  %v810 = vmax.f32 %v714, %v769
  %v811 = vmax.f32 %v715, %v771
  %v812 = vmax.f32 %v716, %v773
  %v813 = vmax.f32 %v717, %v775
  %v814 = vmax.f32 %v718, %v777
  %v815 = vmax.f32 %v719, %v779
  %v816 = vmax.f32 %v720, %v781
  %v817 = vmax.f32 %v721, %v783
  %v818 = vmax.f32 %v722, %v785
  %v819 = vmax.f32 %v723, %v787
  %v820 = vmax.f32 %v788, 0.0
  %v821 = vmax.f32 %v789, 0.0
  %v822 = vmax.f32 %v790, 0.0
  %v823 = vmax.f32 %v791, 0.0
  %v824 = vmax.f32 %v792, 0.0
  %v825 = vmax.f32 %v793, 0.0
  %v826 = vmax.f32 %v794, 0.0
  %v827 = vmax.f32 %v795, 0.0
  %v828 = vmax.f32 %v796, 0.0
  %v829 = vmax.f32 %v797, 0.0
  %v830 = vmax.f32 %v798, 0.0
  %v831 = vmax.f32 %v799, 0.0
  %v832 = vmax.f32 %v800, 0.0
  %v833 = vmax.f32 %v801, 0.0
  %v834 = vmax.f32 %v802, 0.0
  %v835 = vmax.f32 %v803, 0.0
  %v836 = vmax.f32 %v804, 0.0
  %v837 = vmax.f32 %v805, 0.0
  %v838 = vmax.f32 %v806, 0.0
  %v839 = vmax.f32 %v807, 0.0
  %v840 = vmax.f32 %v808, 0.0
  %v841 = vmax.f32 %v809, 0.0
  %v842 = vmax.f32 %v810, 0.0
  %v843 = vmax.f32 %v811, 0.0
  %v844 = vmax.f32 %v812, 0.0
  %v845 = vmax.f32 %v813, 0.0
  %v846 = vmax.f32 %v814, 0.0
  %v847 = vmax.f32 %v815, 0.0
  %v848 = vmax.f32 %v816, 0.0
  %v849 = vmax.f32 %v817, 0.0
  %v850 = vmax.f32 %v818, 0.0
  %v851 = vmax.f32 %v819, 0.0
  %v852 = vpack.c.bf16 %v821, %v820
  %v853 = vpack.c.bf16 %v823, %v822
  %v854 = vpack.c.bf16 %v825, %v824
  %v855 = vpack.c.bf16 %v827, %v826
  %v856 = vpack.c.bf16 %v829, %v828
  %v857 = vpack.c.bf16 %v831, %v830
  %v858 = vpack.c.bf16 %v833, %v832
  %v859 = vpack.c.bf16 %v835, %v834
  %v860 = vpack.c.bf16 %v837, %v836
  %v861 = vpack.c.bf16 %v839, %v838
  %v862 = vpack.c.bf16 %v841, %v840
  %v863 = vpack.c.bf16 %v843, %v842
  %v864 = vpack.c.bf16 %v845, %v844
  %v865 = vpack.c.bf16 %v847, %v846
  %v866 = vpack.c.bf16 %v849, %v848
  %v867 = vpack.c.bf16 %v851, %v850
  %v868 = vld [vmem:[%s6] sm:$0xf]
  %v869 = vld [vmem:[%s6 + $0x4] sm:$0xf]
  %v870 = vld [vmem:[%s6 + $0x8] sm:$0xf]
  %v871 = vld [vmem:[%s6 + $0xc] sm:$0xf]
  %v872 = vld [vmem:[%s7] sm:$0x1]
  %v874 = vperm.slane %v872, 0
  %v880 = vunpack.c.l.b16 %v868
  %v881 = vunpack.c.l.b16 %v869
  %v882 = vunpack.c.l.b16 %v870
  %v883 = vunpack.c.l.b16 %v871
  %v884 = vpack.c.b16 %v881, %v880
  %v885 = vpack.c.b16 %v883, %v882
  %v889 = vsel %vm490, %v852, 0
  %v892 = vsel %vm490, %v853, 0
  %v895 = vsel %vm490, %v854, 0
  %v898 = vsel %vm490, %v855, 0
  %v901 = vsel %vm490, %v856, 0
  %v904 = vsel %vm490, %v857, 0
  %v907 = vsel %vm490, %v858, 0
  %v910 = vsel %vm490, %v859, 0
  %v913 = vsel %vm490, %v860, 0
  %v916 = vsel %vm490, %v861, 0
  %v919 = vsel %vm490, %v862, 0
  %v922 = vsel %vm490, %v863, 0
  %v925 = vsel %vm490, %v864, 0
  %v928 = vsel %vm490, %v865, 0
  %v931 = vsel %vm490, %v866, 0
  %v934 = vsel %vm490, %v867, 0
  %936 = vmatpush.bf16.msra.mxu0 0
  %937 = vmatpush.bf16.msra.mxu0 0
  %938 = vmatpush.bf16.msra.mxu0 0
  %939 = vmatpush.bf16.msra.mxu0 0
  %940 = vmatpush.bf16.msra.mxu0 0
  %941 = vmatpush.bf16.msra.mxu0 0
  %942 = vmatpush.bf16.msra.mxu0 %v885
  %943 = vmatpush.bf16.msra.mxu0 %v884
  %944 = vmatmul.bf16.gmra.mxu0 %v889
  %v945 = vpop.f32.mrf.mxu0
  %v946 = vadd.f32 %v874, %v945
  %v947 = vpop.f32.mrf.mxu0
  %v948 = vadd.f32 %v874, %v947
  %949 = vmatmul.bf16.gmra.mxu0 %v892
  %v950 = vpop.f32.mrf.mxu0
  %v951 = vadd.f32 %v874, %v950
  %v952 = vpop.f32.mrf.mxu0
  %v953 = vadd.f32 %v874, %v952
  %954 = vmatmul.bf16.gmra.mxu0 %v895
  %v955 = vpop.f32.mrf.mxu0
  %v956 = vadd.f32 %v874, %v955
  %v957 = vpop.f32.mrf.mxu0
  %v958 = vadd.f32 %v874, %v957
  %959 = vmatmul.bf16.gmra.mxu0 %v898
  %v960 = vpop.f32.mrf.mxu0
  %v961 = vadd.f32 %v874, %v960
  %v962 = vpop.f32.mrf.mxu0
  %v963 = vadd.f32 %v874, %v962
  %964 = vmatmul.bf16.gmra.mxu0 %v901
  %v965 = vpop.f32.mrf.mxu0
  %v966 = vadd.f32 %v874, %v965
  %v967 = vpop.f32.mrf.mxu0
  %v968 = vadd.f32 %v874, %v967
  %969 = vmatmul.bf16.gmra.mxu0 %v904
  %v970 = vpop.f32.mrf.mxu0
  %v971 = vadd.f32 %v874, %v970
  %v972 = vpop.f32.mrf.mxu0
  %v973 = vadd.f32 %v874, %v972
  %974 = vmatmul.bf16.gmra.mxu0 %v907
  %v975 = vpop.f32.mrf.mxu0
  %v976 = vadd.f32 %v874, %v975
  %v977 = vpop.f32.mrf.mxu0
  %v978 = vadd.f32 %v874, %v977
  %979 = vmatmul.bf16.gmra.mxu0 %v910
  %v980 = vpop.f32.mrf.mxu0
  %v981 = vadd.f32 %v874, %v980
  %v982 = vpop.f32.mrf.mxu0
  %v983 = vadd.f32 %v874, %v982
  %984 = vmatmul.bf16.gmra.mxu0 %v913
  %v985 = vpop.f32.mrf.mxu0
  %v986 = vadd.f32 %v874, %v985
  %v987 = vpop.f32.mrf.mxu0
  %v988 = vadd.f32 %v874, %v987
  %989 = vmatmul.bf16.gmra.mxu0 %v916
  %v990 = vpop.f32.mrf.mxu0
  %v991 = vadd.f32 %v874, %v990
  %v992 = vpop.f32.mrf.mxu0
  %v993 = vadd.f32 %v874, %v992
  %994 = vmatmul.bf16.gmra.mxu0 %v919
  %v995 = vpop.f32.mrf.mxu0
  %v996 = vadd.f32 %v874, %v995
  %v997 = vpop.f32.mrf.mxu0
  %v998 = vadd.f32 %v874, %v997
  %999 = vmatmul.bf16.gmra.mxu0 %v922
  %v1000 = vpop.f32.mrf.mxu0
  %v1001 = vadd.f32 %v874, %v1000
  %v1002 = vpop.f32.mrf.mxu0
  %v1003 = vadd.f32 %v874, %v1002
  %1004 = vmatmul.bf16.gmra.mxu0 %v925
  %v1005 = vpop.f32.mrf.mxu0
  %v1006 = vadd.f32 %v874, %v1005
  %v1007 = vpop.f32.mrf.mxu0
  %v1008 = vadd.f32 %v874, %v1007
  %1009 = vmatmul.bf16.gmra.mxu0 %v928
  %v1010 = vpop.f32.mrf.mxu0
  %v1011 = vadd.f32 %v874, %v1010
  %v1012 = vpop.f32.mrf.mxu0
  %v1013 = vadd.f32 %v874, %v1012
  %1014 = vmatmul.bf16.gmra.mxu0 %v931
  %v1015 = vpop.f32.mrf.mxu0
  %v1016 = vadd.f32 %v874, %v1015
  %v1017 = vpop.f32.mrf.mxu0
  %v1018 = vadd.f32 %v874, %v1017
  %1019 = vmatmul.bf16.gmra.mxu0 %v934
  %v1020 = vpop.f32.mrf.mxu0
  %v1021 = vadd.f32 %v874, %v1020
  %v1022 = vpop.f32.mrf.mxu0
  %v1023 = vadd.f32 %v874, %v1022
  %1024 = vdwg.mxu0
  %v1025 = vlaneseq
  %v1026 = vand.u32 %v1025, 127
  %vm1027 = vcmp.lt.s32.totalorder %v1026, 8
  %v1028 = vsel %vm1027, %v946, -1e+30
  %v1029 = vsel %vm1027, %v948, -1e+30
  %v1030 = vsel %vm1027, %v951, -1e+30
  %v1031 = vsel %vm1027, %v953, -1e+30
  %v1032 = vsel %vm1027, %v956, -1e+30
  %v1033 = vsel %vm1027, %v958, -1e+30
  %v1034 = vsel %vm1027, %v961, -1e+30
  %v1035 = vsel %vm1027, %v963, -1e+30
  %v1036 = vsel %vm1027, %v966, -1e+30
  %v1037 = vsel %vm1027, %v968, -1e+30
  %v1038 = vsel %vm1027, %v971, -1e+30
  %v1039 = vsel %vm1027, %v973, -1e+30
  %v1040 = vsel %vm1027, %v976, -1e+30
  %v1041 = vsel %vm1027, %v978, -1e+30
  %v1042 = vsel %vm1027, %v981, -1e+30
  %v1043 = vsel %vm1027, %v983, -1e+30
  %v1044 = vsel %vm1027, %v986, -1e+30
  %v1045 = vsel %vm1027, %v988, -1e+30
  %v1046 = vsel %vm1027, %v991, -1e+30
  %v1047 = vsel %vm1027, %v993, -1e+30
  %v1048 = vsel %vm1027, %v996, -1e+30
  %v1049 = vsel %vm1027, %v998, -1e+30
  %v1050 = vsel %vm1027, %v1001, -1e+30
  %v1051 = vsel %vm1027, %v1003, -1e+30
  %v1052 = vsel %vm1027, %v1006, -1e+30
  %v1053 = vsel %vm1027, %v1008, -1e+30
  %v1054 = vsel %vm1027, %v1011, -1e+30
  %v1055 = vsel %vm1027, %v1013, -1e+30
  %v1056 = vsel %vm1027, %v1016, -1e+30
  %v1057 = vsel %vm1027, %v1018, -1e+30
  %v1058 = vsel %vm1027, %v1021, -1e+30
  %v1059 = vsel %vm1027, %v1023, -1e+30
  %1060 = vmax.xlane.f32.xlu0 %v1028
  %v1061 = vpop.xlane.xlu0 %1060
  %1062 = vmax.xlane.f32.xlu0 %v1029
  %v1063 = vpop.xlane.xlu0 %1062
  %1064 = vmax.xlane.f32.xlu0 %v1030
  %v1065 = vpop.xlane.xlu0 %1064
  %1066 = vmax.xlane.f32.xlu0 %v1031
  %v1067 = vpop.xlane.xlu0 %1066
  %1068 = vmax.xlane.f32.xlu0 %v1032
  %v1069 = vpop.xlane.xlu0 %1068
  %1070 = vmax.xlane.f32.xlu0 %v1033
  %v1071 = vpop.xlane.xlu0 %1070
  %1072 = vmax.xlane.f32.xlu0 %v1034
  %v1073 = vpop.xlane.xlu0 %1072
  %1074 = vmax.xlane.f32.xlu0 %v1035
  %v1075 = vpop.xlane.xlu0 %1074
  %1076 = vmax.xlane.f32.xlu0 %v1036
  %v1077 = vpop.xlane.xlu0 %1076
  %1078 = vmax.xlane.f32.xlu0 %v1037
  %v1079 = vpop.xlane.xlu0 %1078
  %1080 = vmax.xlane.f32.xlu0 %v1038
  %v1081 = vpop.xlane.xlu0 %1080
  %1082 = vmax.xlane.f32.xlu0 %v1039
  %v1083 = vpop.xlane.xlu0 %1082
  %1084 = vmax.xlane.f32.xlu0 %v1040
  %v1085 = vpop.xlane.xlu0 %1084
  %1086 = vmax.xlane.f32.xlu0 %v1041
  %v1087 = vpop.xlane.xlu0 %1086
  %1088 = vmax.xlane.f32.xlu0 %v1042
  %v1089 = vpop.xlane.xlu0 %1088
  %1090 = vmax.xlane.f32.xlu0 %v1043
  %v1091 = vpop.xlane.xlu0 %1090
  %1092 = vmax.xlane.f32.xlu0 %v1044
  %v1093 = vpop.xlane.xlu0 %1092
  %1094 = vmax.xlane.f32.xlu0 %v1045
  %v1095 = vpop.xlane.xlu0 %1094
  %1096 = vmax.xlane.f32.xlu0 %v1046
  %v1097 = vpop.xlane.xlu0 %1096
  %1098 = vmax.xlane.f32.xlu0 %v1047
  %v1099 = vpop.xlane.xlu0 %1098
  %1100 = vmax.xlane.f32.xlu0 %v1048
  %v1101 = vpop.xlane.xlu0 %1100
  %1102 = vmax.xlane.f32.xlu0 %v1049
  %v1103 = vpop.xlane.xlu0 %1102
  %1104 = vmax.xlane.f32.xlu0 %v1050
  %v1105 = vpop.xlane.xlu0 %1104
  %1106 = vmax.xlane.f32.xlu0 %v1051
  %v1107 = vpop.xlane.xlu0 %1106
  %1108 = vmax.xlane.f32.xlu0 %v1052
  %v1109 = vpop.xlane.xlu0 %1108
  %1110 = vmax.xlane.f32.xlu0 %v1053
  %v1111 = vpop.xlane.xlu0 %1110
  %1112 = vmax.xlane.f32.xlu0 %v1054
  %v1113 = vpop.xlane.xlu0 %1112
  %1114 = vmax.xlane.f32.xlu0 %v1055
  %v1115 = vpop.xlane.xlu0 %1114
  %1116 = vmax.xlane.f32.xlu0 %v1056
  %v1117 = vpop.xlane.xlu0 %1116
  %1118 = vmax.xlane.f32.xlu0 %v1057
  %v1119 = vpop.xlane.xlu0 %1118
  %1120 = vmax.xlane.f32.xlu0 %v1058
  %v1121 = vpop.xlane.xlu0 %1120
  %1122 = vmax.xlane.f32.xlu0 %v1059
  %v1123 = vpop.xlane.xlu0 %1122
  %v1124 = vsub.f32 %v1028, %v1061
  %v1125 = vsub.f32 %v1029, %v1063
  %v1126 = vsub.f32 %v1030, %v1065
  %v1127 = vsub.f32 %v1031, %v1067
  %v1128 = vsub.f32 %v1032, %v1069
  %v1129 = vsub.f32 %v1033, %v1071
  %v1130 = vsub.f32 %v1034, %v1073
  %v1131 = vsub.f32 %v1035, %v1075
  %v1132 = vsub.f32 %v1036, %v1077
  %v1133 = vsub.f32 %v1037, %v1079
  %v1134 = vsub.f32 %v1038, %v1081
  %v1135 = vsub.f32 %v1039, %v1083
  %v1136 = vsub.f32 %v1040, %v1085
  %v1137 = vsub.f32 %v1041, %v1087
  %v1138 = vsub.f32 %v1042, %v1089
  %v1139 = vsub.f32 %v1043, %v1091
  %v1140 = vsub.f32 %v1044, %v1093
  %v1141 = vsub.f32 %v1045, %v1095
  %v1142 = vsub.f32 %v1046, %v1097
  %v1143 = vsub.f32 %v1047, %v1099
  %v1144 = vsub.f32 %v1048, %v1101
  %v1145 = vsub.f32 %v1049, %v1103
  %v1146 = vsub.f32 %v1050, %v1105
  %v1147 = vsub.f32 %v1051, %v1107
  %v1148 = vsub.f32 %v1052, %v1109
  %v1149 = vsub.f32 %v1053, %v1111
  %v1150 = vsub.f32 %v1054, %v1113
  %v1151 = vsub.f32 %v1055, %v1115
  %v1152 = vsub.f32 %v1056, %v1117
  %v1153 = vsub.f32 %v1057, %v1119
  %v1154 = vsub.f32 %v1058, %v1121
  %v1155 = vsub.f32 %v1059, %v1123
  %v1156 = vmul.f32 %v1124, 1.442695
  %v1157 = vpow.pop %v1156
  %v1158 = vmul.f32 %v1125, 1.442695
  %v1159 = vpow.pop %v1158
  %v1160 = vmul.f32 %v1126, 1.442695
  %v1161 = vpow.pop %v1160
  %v1162 = vmul.f32 %v1127, 1.442695
  %v1163 = vpow.pop %v1162
  %v1164 = vmul.f32 %v1128, 1.442695
  %v1165 = vpow.pop %v1164
  %v1166 = vmul.f32 %v1129, 1.442695
  %v1167 = vpow.pop %v1166
  %v1168 = vmul.f32 %v1130, 1.442695
  %v1169 = vpow.pop %v1168
  %v1170 = vmul.f32 %v1131, 1.442695
  %v1171 = vpow.pop %v1170
  %v1172 = vmul.f32 %v1132, 1.442695
  %v1173 = vpow.pop %v1172
  %v1174 = vmul.f32 %v1133, 1.442695
  %v1175 = vpow.pop %v1174
  %v1176 = vmul.f32 %v1134, 1.442695
  %v1177 = vpow.pop %v1176
  %v1178 = vmul.f32 %v1135, 1.442695
  %v1179 = vpow.pop %v1178
  %v1180 = vmul.f32 %v1136, 1.442695
  %v1181 = vpow.pop %v1180
  %v1182 = vmul.f32 %v1137, 1.442695
  %v1183 = vpow.pop %v1182
  %v1184 = vmul.f32 %v1138, 1.442695
  %v1185 = vpow.pop %v1184
  %v1186 = vmul.f32 %v1139, 1.442695
  %v1187 = vpow.pop %v1186
  %v1188 = vmul.f32 %v1140, 1.442695
  %v1189 = vpow.pop %v1188
  %v1190 = vmul.f32 %v1141, 1.442695
  %v1191 = vpow.pop %v1190
  %v1192 = vmul.f32 %v1142, 1.442695
  %v1193 = vpow.pop %v1192
  %v1194 = vmul.f32 %v1143, 1.442695
  %v1195 = vpow.pop %v1194
  %v1196 = vmul.f32 %v1144, 1.442695
  %v1197 = vpow.pop %v1196
  %v1198 = vmul.f32 %v1145, 1.442695
  %v1199 = vpow.pop %v1198
  %v1200 = vmul.f32 %v1146, 1.442695
  %v1201 = vpow.pop %v1200
  %v1202 = vmul.f32 %v1147, 1.442695
  %v1203 = vpow.pop %v1202
  %v1204 = vmul.f32 %v1148, 1.442695
  %v1205 = vpow.pop %v1204
  %v1206 = vmul.f32 %v1149, 1.442695
  %v1207 = vpow.pop %v1206
  %v1208 = vmul.f32 %v1150, 1.442695
  %v1209 = vpow.pop %v1208
  %v1210 = vmul.f32 %v1151, 1.442695
  %v1211 = vpow.pop %v1210
  %v1212 = vmul.f32 %v1152, 1.442695
  %v1213 = vpow.pop %v1212
  %v1214 = vmul.f32 %v1153, 1.442695
  %v1215 = vpow.pop %v1214
  %v1216 = vmul.f32 %v1154, 1.442695
  %v1217 = vpow.pop %v1216
  %v1218 = vmul.f32 %v1155, 1.442695
  %v1219 = vpow.pop %v1218
  %v1220 = vsel %vm1027, %v1157, 0.0
  %v1221 = vsel %vm1027, %v1159, 0.0
  %v1222 = vsel %vm1027, %v1161, 0.0
  %v1223 = vsel %vm1027, %v1163, 0.0
  %v1224 = vsel %vm1027, %v1165, 0.0
  %v1225 = vsel %vm1027, %v1167, 0.0
  %v1226 = vsel %vm1027, %v1169, 0.0
  %v1227 = vsel %vm1027, %v1171, 0.0
  %v1228 = vsel %vm1027, %v1173, 0.0
  %v1229 = vsel %vm1027, %v1175, 0.0
  %v1230 = vsel %vm1027, %v1177, 0.0
  %v1231 = vsel %vm1027, %v1179, 0.0
  %v1232 = vsel %vm1027, %v1181, 0.0
  %v1233 = vsel %vm1027, %v1183, 0.0
  %v1234 = vsel %vm1027, %v1185, 0.0
  %v1235 = vsel %vm1027, %v1187, 0.0
  %v1236 = vsel %vm1027, %v1189, 0.0
  %v1237 = vsel %vm1027, %v1191, 0.0
  %v1238 = vsel %vm1027, %v1193, 0.0
  %v1239 = vsel %vm1027, %v1195, 0.0
  %v1240 = vsel %vm1027, %v1197, 0.0
  %v1241 = vsel %vm1027, %v1199, 0.0
  %v1242 = vsel %vm1027, %v1201, 0.0
  %v1243 = vsel %vm1027, %v1203, 0.0
  %v1244 = vsel %vm1027, %v1205, 0.0
  %v1245 = vsel %vm1027, %v1207, 0.0
  %v1246 = vsel %vm1027, %v1209, 0.0
  %v1247 = vsel %vm1027, %v1211, 0.0
  %v1248 = vsel %vm1027, %v1213, 0.0
  %v1249 = vsel %vm1027, %v1215, 0.0
  %v1250 = vsel %vm1027, %v1217, 0.0
  %v1251 = vsel %vm1027, %v1219, 0.0
  %1252 = vadd.xlane.f32.xlu0 %v1220
  %v1253 = vpop.xlane.xlu0 %1252
  %1254 = vadd.xlane.f32.xlu0 %v1221
  %v1255 = vpop.xlane.xlu0 %1254
  %1256 = vadd.xlane.f32.xlu0 %v1222
  %v1257 = vpop.xlane.xlu0 %1256
  %1258 = vadd.xlane.f32.xlu0 %v1223
  %v1259 = vpop.xlane.xlu0 %1258
  %1260 = vadd.xlane.f32.xlu0 %v1224
  %v1261 = vpop.xlane.xlu0 %1260
  %1262 = vadd.xlane.f32.xlu0 %v1225
  %v1263 = vpop.xlane.xlu0 %1262
  %1264 = vadd.xlane.f32.xlu0 %v1226
  %v1265 = vpop.xlane.xlu0 %1264
  %1266 = vadd.xlane.f32.xlu0 %v1227
  %v1267 = vpop.xlane.xlu0 %1266
  %1268 = vadd.xlane.f32.xlu0 %v1228
  %v1269 = vpop.xlane.xlu0 %1268
  %1270 = vadd.xlane.f32.xlu0 %v1229
  %v1271 = vpop.xlane.xlu0 %1270
  %1272 = vadd.xlane.f32.xlu0 %v1230
  %v1273 = vpop.xlane.xlu0 %1272
  %1274 = vadd.xlane.f32.xlu0 %v1231
  %v1275 = vpop.xlane.xlu0 %1274
  %1276 = vadd.xlane.f32.xlu0 %v1232
  %v1277 = vpop.xlane.xlu0 %1276
  %1278 = vadd.xlane.f32.xlu0 %v1233
  %v1279 = vpop.xlane.xlu0 %1278
  %1280 = vadd.xlane.f32.xlu0 %v1234
  %v1281 = vpop.xlane.xlu0 %1280
  %1282 = vadd.xlane.f32.xlu0 %v1235
  %v1283 = vpop.xlane.xlu0 %1282
  %1284 = vadd.xlane.f32.xlu0 %v1236
  %v1285 = vpop.xlane.xlu0 %1284
  %1286 = vadd.xlane.f32.xlu0 %v1237
  %v1287 = vpop.xlane.xlu0 %1286
  %1288 = vadd.xlane.f32.xlu0 %v1238
  %v1289 = vpop.xlane.xlu0 %1288
  %1290 = vadd.xlane.f32.xlu0 %v1239
  %v1291 = vpop.xlane.xlu0 %1290
  %1292 = vadd.xlane.f32.xlu0 %v1240
  %v1293 = vpop.xlane.xlu0 %1292
  %1294 = vadd.xlane.f32.xlu0 %v1241
  %v1295 = vpop.xlane.xlu0 %1294
  %1296 = vadd.xlane.f32.xlu0 %v1242
  %v1297 = vpop.xlane.xlu0 %1296
  %1298 = vadd.xlane.f32.xlu0 %v1243
  %v1299 = vpop.xlane.xlu0 %1298
  %1300 = vadd.xlane.f32.xlu0 %v1244
  %v1301 = vpop.xlane.xlu0 %1300
  %1302 = vadd.xlane.f32.xlu0 %v1245
  %v1303 = vpop.xlane.xlu0 %1302
  %1304 = vadd.xlane.f32.xlu0 %v1246
  %v1305 = vpop.xlane.xlu0 %1304
  %1306 = vadd.xlane.f32.xlu0 %v1247
  %v1307 = vpop.xlane.xlu0 %1306
  %1308 = vadd.xlane.f32.xlu0 %v1248
  %v1309 = vpop.xlane.xlu0 %1308
  %1310 = vadd.xlane.f32.xlu0 %v1249
  %v1311 = vpop.xlane.xlu0 %1310
  %1312 = vadd.xlane.f32.xlu0 %v1250
  %v1313 = vpop.xlane.xlu0 %1312
  %1314 = vadd.xlane.f32.xlu0 %v1251
  %v1315 = vpop.xlane.xlu0 %1314
  %v1316 = vlog2.pop %v1253
  %v1317 = vmul.f32 %v1316, 0.6931472
  %v1318 = vlog2.pop %v1255
  %v1319 = vmul.f32 %v1318, 0.6931472
  %v1320 = vlog2.pop %v1257
  %v1321 = vmul.f32 %v1320, 0.6931472
  %v1322 = vlog2.pop %v1259
  %v1323 = vmul.f32 %v1322, 0.6931472
  %v1324 = vlog2.pop %v1261
  %v1325 = vmul.f32 %v1324, 0.6931472
  %v1326 = vlog2.pop %v1263
  %v1327 = vmul.f32 %v1326, 0.6931472
  %v1328 = vlog2.pop %v1265
  %v1329 = vmul.f32 %v1328, 0.6931472
  %v1330 = vlog2.pop %v1267
  %v1331 = vmul.f32 %v1330, 0.6931472
  %v1332 = vlog2.pop %v1269
  %v1333 = vmul.f32 %v1332, 0.6931472
  %v1334 = vlog2.pop %v1271
  %v1335 = vmul.f32 %v1334, 0.6931472
  %v1336 = vlog2.pop %v1273
  %v1337 = vmul.f32 %v1336, 0.6931472
  %v1338 = vlog2.pop %v1275
  %v1339 = vmul.f32 %v1338, 0.6931472
  %v1340 = vlog2.pop %v1277
  %v1341 = vmul.f32 %v1340, 0.6931472
  %v1342 = vlog2.pop %v1279
  %v1343 = vmul.f32 %v1342, 0.6931472
  %v1344 = vlog2.pop %v1281
  %v1345 = vmul.f32 %v1344, 0.6931472
  %v1346 = vlog2.pop %v1283
  %v1347 = vmul.f32 %v1346, 0.6931472
  %v1348 = vlog2.pop %v1285
  %v1349 = vmul.f32 %v1348, 0.6931472
  %v1350 = vlog2.pop %v1287
  %v1351 = vmul.f32 %v1350, 0.6931472
  %v1352 = vlog2.pop %v1289
  %v1353 = vmul.f32 %v1352, 0.6931472
  %v1354 = vlog2.pop %v1291
  %v1355 = vmul.f32 %v1354, 0.6931472
  %v1356 = vlog2.pop %v1293
  %v1357 = vmul.f32 %v1356, 0.6931472
  %v1358 = vlog2.pop %v1295
  %v1359 = vmul.f32 %v1358, 0.6931472
  %v1360 = vlog2.pop %v1297
  %v1361 = vmul.f32 %v1360, 0.6931472
  %v1362 = vlog2.pop %v1299
  %v1363 = vmul.f32 %v1362, 0.6931472
  %v1364 = vlog2.pop %v1301
  %v1365 = vmul.f32 %v1364, 0.6931472
  %v1366 = vlog2.pop %v1303
  %v1367 = vmul.f32 %v1366, 0.6931472
  %v1368 = vlog2.pop %v1305
  %v1369 = vmul.f32 %v1368, 0.6931472
  %v1370 = vlog2.pop %v1307
  %v1371 = vmul.f32 %v1370, 0.6931472
  %v1372 = vlog2.pop %v1309
  %v1373 = vmul.f32 %v1372, 0.6931472
  %v1374 = vlog2.pop %v1311
  %v1375 = vmul.f32 %v1374, 0.6931472
  %v1376 = vlog2.pop %v1313
  %v1377 = vmul.f32 %v1376, 0.6931472
  %v1378 = vlog2.pop %v1315
  %v1379 = vmul.f32 %v1378, 0.6931472
  %v1380 = vsub.f32 %v1124, %v1317
  %v1381 = vsub.f32 %v1125, %v1319
  %v1382 = vsub.f32 %v1126, %v1321
  %v1383 = vsub.f32 %v1127, %v1323
  %v1384 = vsub.f32 %v1128, %v1325
  %v1385 = vsub.f32 %v1129, %v1327
  %v1386 = vsub.f32 %v1130, %v1329
  %v1387 = vsub.f32 %v1131, %v1331
  %v1388 = vsub.f32 %v1132, %v1333
  %v1389 = vsub.f32 %v1133, %v1335
  %v1390 = vsub.f32 %v1134, %v1337
  %v1391 = vsub.f32 %v1135, %v1339
  %v1392 = vsub.f32 %v1136, %v1341
  %v1393 = vsub.f32 %v1137, %v1343
  %v1394 = vsub.f32 %v1138, %v1345
  %v1395 = vsub.f32 %v1139, %v1347
  %v1396 = vsub.f32 %v1140, %v1349
  %v1397 = vsub.f32 %v1141, %v1351
  %v1398 = vsub.f32 %v1142, %v1353
  %v1399 = vsub.f32 %v1143, %v1355
  %v1400 = vsub.f32 %v1144, %v1357
  %v1401 = vsub.f32 %v1145, %v1359
  %v1402 = vsub.f32 %v1146, %v1361
  %v1403 = vsub.f32 %v1147, %v1363
  %v1404 = vsub.f32 %v1148, %v1365
  %v1405 = vsub.f32 %v1149, %v1367
  %v1406 = vsub.f32 %v1150, %v1369
  %v1407 = vsub.f32 %v1151, %v1371
  %v1408 = vsub.f32 %v1152, %v1373
  %v1409 = vsub.f32 %v1153, %v1375
  %v1410 = vsub.f32 %v1154, %v1377
  %v1411 = vsub.f32 %v1155, %v1379
  %v1412 = vpack.c.bf16 %v1380, %v1380
  %v1413 = vpack.c.bf16 %v1381, %v1381
  %v1414 = vpack.c.bf16 %v1382, %v1382
  %v1415 = vpack.c.bf16 %v1383, %v1383
  %v1416 = vpack.c.bf16 %v1384, %v1384
  %v1417 = vpack.c.bf16 %v1385, %v1385
  %v1418 = vpack.c.bf16 %v1386, %v1386
  %v1419 = vpack.c.bf16 %v1387, %v1387
  %v1420 = vpack.c.bf16 %v1388, %v1388
  %v1421 = vpack.c.bf16 %v1389, %v1389
  %v1422 = vpack.c.bf16 %v1390, %v1390
  %v1423 = vpack.c.bf16 %v1391, %v1391
  %v1424 = vpack.c.bf16 %v1392, %v1392
  %v1425 = vpack.c.bf16 %v1393, %v1393
  %v1426 = vpack.c.bf16 %v1394, %v1394
  %v1427 = vpack.c.bf16 %v1395, %v1395
  %v1428 = vpack.c.bf16 %v1396, %v1396
  %v1429 = vpack.c.bf16 %v1397, %v1397
  %v1430 = vpack.c.bf16 %v1398, %v1398
  %v1431 = vpack.c.bf16 %v1399, %v1399
  %v1432 = vpack.c.bf16 %v1400, %v1400
  %v1433 = vpack.c.bf16 %v1401, %v1401
  %v1434 = vpack.c.bf16 %v1402, %v1402
  %v1435 = vpack.c.bf16 %v1403, %v1403
  %v1436 = vpack.c.bf16 %v1404, %v1404
  %v1437 = vpack.c.bf16 %v1405, %v1405
  %v1438 = vpack.c.bf16 %v1406, %v1406
  %v1439 = vpack.c.bf16 %v1407, %v1407
  %v1440 = vpack.c.bf16 %v1408, %v1408
  %v1441 = vpack.c.bf16 %v1409, %v1409
  %v1442 = vpack.c.bf16 %v1410, %v1410
  %v1443 = vpack.c.bf16 %v1411, %v1411
  %1444 = vst [vmem:[%s8] sm:$0xf] %v1412
  %1445 = vst [vmem:[%s8 + $0x4] sm:$0xf] %v1413
  %1446 = vst [vmem:[%s8 + $0x8] sm:$0xf] %v1414
  %1447 = vst [vmem:[%s8 + $0xc] sm:$0xf] %v1415
  %1448 = vst [vmem:[%s8 + $0x10] sm:$0xf] %v1416
  %1449 = vst [vmem:[%s8 + $0x14] sm:$0xf] %v1417
  %1450 = vst [vmem:[%s8 + $0x18] sm:$0xf] %v1418
  %1451 = vst [vmem:[%s8 + $0x1c] sm:$0xf] %v1419
  %1452 = vst [vmem:[%s8 + $0x20] sm:$0xf] %v1420
  %1453 = vst [vmem:[%s8 + $0x24] sm:$0xf] %v1421
  %1454 = vst [vmem:[%s8 + $0x28] sm:$0xf] %v1422
  %1455 = vst [vmem:[%s8 + $0x2c] sm:$0xf] %v1423
  %1456 = vst [vmem:[%s8 + $0x30] sm:$0xf] %v1424
  %1457 = vst [vmem:[%s8 + $0x34] sm:$0xf] %v1425
  %1458 = vst [vmem:[%s8 + $0x38] sm:$0xf] %v1426
  %1459 = vst [vmem:[%s8 + $0x3c] sm:$0xf] %v1427
  %1460 = vst [vmem:[%s8 + $0x40] sm:$0xf] %v1428
  %1461 = vst [vmem:[%s8 + $0x44] sm:$0xf] %v1429
  %1462 = vst [vmem:[%s8 + $0x48] sm:$0xf] %v1430
  %1463 = vst [vmem:[%s8 + $0x4c] sm:$0xf] %v1431
  %1464 = vst [vmem:[%s8 + $0x50] sm:$0xf] %v1432
  %1465 = vst [vmem:[%s8 + $0x54] sm:$0xf] %v1433
  %1466 = vst [vmem:[%s8 + $0x58] sm:$0xf] %v1434
  %1467 = vst [vmem:[%s8 + $0x5c] sm:$0xf] %v1435
  %1468 = vst [vmem:[%s8 + $0x60] sm:$0xf] %v1436
  %1469 = vst [vmem:[%s8 + $0x64] sm:$0xf] %v1437
  %1470 = vst [vmem:[%s8 + $0x68] sm:$0xf] %v1438
  %1471 = vst [vmem:[%s8 + $0x6c] sm:$0xf] %v1439
  %1472 = vst [vmem:[%s8 + $0x70] sm:$0xf] %v1440
  %1473 = vst [vmem:[%s8 + $0x74] sm:$0xf] %v1441
  %1474 = vst [vmem:[%s8 + $0x78] sm:$0xf] %v1442
  %1475 = vst [vmem:[%s8 + $0x7c] sm:$0xf] %v1443
  %v1476 = vld [vmem:[%s1] sm:$0xff]
  %v1477 = vld [vmem:[%s1 + $0x8] sm:$0xff]
  %v1478 = vld [vmem:[%s1 + $0x10] sm:$0xff]
  %v1479 = vld [vmem:[%s1 + $0x18] sm:$0xff]
  %v1480 = vld [vmem:[%s1 + $0x20] sm:$0xff]
  %v1481 = vld [vmem:[%s1 + $0x28] sm:$0xff]
  %v1482 = vld [vmem:[%s1 + $0x30] sm:$0xff]
  %v1483 = vld [vmem:[%s1 + $0x38] sm:$0xff]
  %v1484 = vld [vmem:[%s1 + $0x40] sm:$0xff]
  %v1485 = vld [vmem:[%s1 + $0x48] sm:$0xff]
  %v1486 = vld [vmem:[%s1 + $0x50] sm:$0xff]
  %v1487 = vld [vmem:[%s1 + $0x58] sm:$0xff]
  %v1488 = vld [vmem:[%s1 + $0x60] sm:$0xff]
  %v1489 = vld [vmem:[%s1 + $0x68] sm:$0xff]
  %v1490 = vld [vmem:[%s1 + $0x70] sm:$0xff]
  %v1491 = vld [vmem:[%s1 + $0x78] sm:$0xff]
  %v1492 = vld [vmem:[%s1 + $0x80] sm:$0xff]
  %v1493 = vld [vmem:[%s1 + $0x88] sm:$0xff]
  %v1494 = vld [vmem:[%s1 + $0x90] sm:$0xff]
  %v1495 = vld [vmem:[%s1 + $0x98] sm:$0xff]
  %v1496 = vld [vmem:[%s1 + $0xa0] sm:$0xff]
  %v1497 = vld [vmem:[%s1 + $0xa8] sm:$0xff]
  %v1498 = vld [vmem:[%s1 + $0xb0] sm:$0xff]
  %v1499 = vld [vmem:[%s1 + $0xb8] sm:$0xff]
  %v1500 = vld [vmem:[%s1 + $0xc0] sm:$0xff]
  %v1501 = vld [vmem:[%s1 + $0xc8] sm:$0xff]
  %v1502 = vld [vmem:[%s1 + $0xd0] sm:$0xff]
  %v1503 = vld [vmem:[%s1 + $0xd8] sm:$0xff]
  %v1504 = vld [vmem:[%s1 + $0xe0] sm:$0xff]
  %v1505 = vld [vmem:[%s1 + $0xe8] sm:$0xff]
  %v1506 = vld [vmem:[%s1 + $0xf0] sm:$0xff]
  %v1507 = vld [vmem:[%s1 + $0xf8] sm:$0xff]
  %1508 = vset.pattern.permute.xlu0 0
  %1509 = vperm.xlu0 %1508, %v1476
  %v1510 = vpop.permute.xlu0 %1509
  %1511 = vset.pattern.permute.xlu0 0
  %1512 = vperm.xlu0 %1511, %v1477
  %v1513 = vpop.permute.xlu0 %1512
  %1514 = vset.pattern.permute.xlu0 0
  %1515 = vperm.xlu0 %1514, %v1478
  %v1516 = vpop.permute.xlu0 %1515
  %1517 = vset.pattern.permute.xlu0 0
  %1518 = vperm.xlu0 %1517, %v1479
  %v1519 = vpop.permute.xlu0 %1518
  %1520 = vset.pattern.permute.xlu0 0
  %1521 = vperm.xlu0 %1520, %v1480
  %v1522 = vpop.permute.xlu0 %1521
  %1523 = vset.pattern.permute.xlu0 0
  %1524 = vperm.xlu0 %1523, %v1481
  %v1525 = vpop.permute.xlu0 %1524
  %1526 = vset.pattern.permute.xlu0 0
  %1527 = vperm.xlu0 %1526, %v1482
  %v1528 = vpop.permute.xlu0 %1527
  %1529 = vset.pattern.permute.xlu0 0
  %1530 = vperm.xlu0 %1529, %v1483
  %v1531 = vpop.permute.xlu0 %1530
  %1532 = vset.pattern.permute.xlu0 0
  %1533 = vperm.xlu0 %1532, %v1484
  %v1534 = vpop.permute.xlu0 %1533
  %1535 = vset.pattern.permute.xlu0 0
  %1536 = vperm.xlu0 %1535, %v1485
  %v1537 = vpop.permute.xlu0 %1536
  %1538 = vset.pattern.permute.xlu0 0
  %1539 = vperm.xlu0 %1538, %v1486
  %v1540 = vpop.permute.xlu0 %1539
  %1541 = vset.pattern.permute.xlu0 0
  %1542 = vperm.xlu0 %1541, %v1487
  %v1543 = vpop.permute.xlu0 %1542
  %1544 = vset.pattern.permute.xlu0 0
  %1545 = vperm.xlu0 %1544, %v1488
  %v1546 = vpop.permute.xlu0 %1545
  %1547 = vset.pattern.permute.xlu0 0
  %1548 = vperm.xlu0 %1547, %v1489
  %v1549 = vpop.permute.xlu0 %1548
  %1550 = vset.pattern.permute.xlu0 0
  %1551 = vperm.xlu0 %1550, %v1490
  %v1552 = vpop.permute.xlu0 %1551
  %1553 = vset.pattern.permute.xlu0 0
  %1554 = vperm.xlu0 %1553, %v1491
  %v1555 = vpop.permute.xlu0 %1554
  %1556 = vset.pattern.permute.xlu0 0
  %1557 = vperm.xlu0 %1556, %v1492
  %v1558 = vpop.permute.xlu0 %1557
  %1559 = vset.pattern.permute.xlu0 0
  %1560 = vperm.xlu0 %1559, %v1493
  %v1561 = vpop.permute.xlu0 %1560
  %1562 = vset.pattern.permute.xlu0 0
  %1563 = vperm.xlu0 %1562, %v1494
  %v1564 = vpop.permute.xlu0 %1563
  %1565 = vset.pattern.permute.xlu0 0
  %1566 = vperm.xlu0 %1565, %v1495
  %v1567 = vpop.permute.xlu0 %1566
  %1568 = vset.pattern.permute.xlu0 0
  %1569 = vperm.xlu0 %1568, %v1496
  %v1570 = vpop.permute.xlu0 %1569
  %1571 = vset.pattern.permute.xlu0 0
  %1572 = vperm.xlu0 %1571, %v1497
  %v1573 = vpop.permute.xlu0 %1572
  %1574 = vset.pattern.permute.xlu0 0
  %1575 = vperm.xlu0 %1574, %v1498
  %v1576 = vpop.permute.xlu0 %1575
  %1577 = vset.pattern.permute.xlu0 0
  %1578 = vperm.xlu0 %1577, %v1499
  %v1579 = vpop.permute.xlu0 %1578
  %1580 = vset.pattern.permute.xlu0 0
  %1581 = vperm.xlu0 %1580, %v1500
  %v1582 = vpop.permute.xlu0 %1581
  %1583 = vset.pattern.permute.xlu0 0
  %1584 = vperm.xlu0 %1583, %v1501
  %v1585 = vpop.permute.xlu0 %1584
  %1586 = vset.pattern.permute.xlu0 0
  %1587 = vperm.xlu0 %1586, %v1502
  %v1588 = vpop.permute.xlu0 %1587
  %1589 = vset.pattern.permute.xlu0 0
  %1590 = vperm.xlu0 %1589, %v1503
  %v1591 = vpop.permute.xlu0 %1590
  %1592 = vset.pattern.permute.xlu0 0
  %1593 = vperm.xlu0 %1592, %v1504
  %v1594 = vpop.permute.xlu0 %1593
  %1595 = vset.pattern.permute.xlu0 0
  %1596 = vperm.xlu0 %1595, %v1505
  %v1597 = vpop.permute.xlu0 %1596
  %1598 = vset.pattern.permute.xlu0 0
  %1599 = vperm.xlu0 %1598, %v1506
  %v1600 = vpop.permute.xlu0 %1599
  %1601 = vset.pattern.permute.xlu0 0
  %1602 = vperm.xlu0 %1601, %v1507
  %v1603 = vpop.permute.xlu0 %1602
  %vm1604 = vcmp.eq.s32.totalorder %v1026, %v1510
  %vm1605 = vcmp.eq.s32.totalorder %v1026, %v1513
  %vm1606 = vcmp.eq.s32.totalorder %v1026, %v1516
  %vm1607 = vcmp.eq.s32.totalorder %v1026, %v1519
  %vm1608 = vcmp.eq.s32.totalorder %v1026, %v1522
  %vm1609 = vcmp.eq.s32.totalorder %v1026, %v1525
  %vm1610 = vcmp.eq.s32.totalorder %v1026, %v1528
  %vm1611 = vcmp.eq.s32.totalorder %v1026, %v1531
  %vm1612 = vcmp.eq.s32.totalorder %v1026, %v1534
  %vm1613 = vcmp.eq.s32.totalorder %v1026, %v1537
  %vm1614 = vcmp.eq.s32.totalorder %v1026, %v1540
  %vm1615 = vcmp.eq.s32.totalorder %v1026, %v1543
  %vm1616 = vcmp.eq.s32.totalorder %v1026, %v1546
  %vm1617 = vcmp.eq.s32.totalorder %v1026, %v1549
  %vm1618 = vcmp.eq.s32.totalorder %v1026, %v1552
  %vm1619 = vcmp.eq.s32.totalorder %v1026, %v1555
  %vm1620 = vcmp.eq.s32.totalorder %v1026, %v1558
  %vm1621 = vcmp.eq.s32.totalorder %v1026, %v1561
  %vm1622 = vcmp.eq.s32.totalorder %v1026, %v1564
  %vm1623 = vcmp.eq.s32.totalorder %v1026, %v1567
  %vm1624 = vcmp.eq.s32.totalorder %v1026, %v1570
  %vm1625 = vcmp.eq.s32.totalorder %v1026, %v1573
  %vm1626 = vcmp.eq.s32.totalorder %v1026, %v1576
  %vm1627 = vcmp.eq.s32.totalorder %v1026, %v1579
  %vm1628 = vcmp.eq.s32.totalorder %v1026, %v1582
  %vm1629 = vcmp.eq.s32.totalorder %v1026, %v1585
  %vm1630 = vcmp.eq.s32.totalorder %v1026, %v1588
  %vm1631 = vcmp.eq.s32.totalorder %v1026, %v1591
  %vm1632 = vcmp.eq.s32.totalorder %v1026, %v1594
  %vm1633 = vcmp.eq.s32.totalorder %v1026, %v1597
  %vm1634 = vcmp.eq.s32.totalorder %v1026, %v1600
  %vm1635 = vcmp.eq.s32.totalorder %v1026, %v1603
  %v1636 = vsel %vm1604, 1, 0
  %v1637 = vsel %vm1605, 1, 0
  %v1638 = vsel %vm1606, 1, 0
  %v1639 = vsel %vm1607, 1, 0
  %v1640 = vsel %vm1608, 1, 0
  %v1641 = vsel %vm1609, 1, 0
  %v1642 = vsel %vm1610, 1, 0
  %v1643 = vsel %vm1611, 1, 0
  %v1644 = vsel %vm1612, 1, 0
  %v1645 = vsel %vm1613, 1, 0
  %v1646 = vsel %vm1614, 1, 0
  %v1647 = vsel %vm1615, 1, 0
  %v1648 = vsel %vm1616, 1, 0
  %v1649 = vsel %vm1617, 1, 0
  %v1650 = vsel %vm1618, 1, 0
  %v1651 = vsel %vm1619, 1, 0
  %v1652 = vsel %vm1620, 1, 0
  %v1653 = vsel %vm1621, 1, 0
  %v1654 = vsel %vm1622, 1, 0
  %v1655 = vsel %vm1623, 1, 0
  %v1656 = vsel %vm1624, 1, 0
  %v1657 = vsel %vm1625, 1, 0
  %v1658 = vsel %vm1626, 1, 0
  %v1659 = vsel %vm1627, 1, 0
  %v1660 = vsel %vm1628, 1, 0
  %v1661 = vsel %vm1629, 1, 0
  %v1662 = vsel %vm1630, 1, 0
  %v1663 = vsel %vm1631, 1, 0
  %v1664 = vsel %vm1632, 1, 0
  %v1665 = vsel %vm1633, 1, 0
  %v1666 = vsel %vm1634, 1, 0
  %v1667 = vsel %vm1635, 1, 0
  %v1668 = vcvt.s32.f32 %v1636
  %v1669 = vcvt.s32.f32 %v1637
  %v1670 = vcvt.s32.f32 %v1638
  %v1671 = vcvt.s32.f32 %v1639
  %v1672 = vcvt.s32.f32 %v1640
  %v1673 = vcvt.s32.f32 %v1641
  %v1674 = vcvt.s32.f32 %v1642
  %v1675 = vcvt.s32.f32 %v1643
  %v1676 = vcvt.s32.f32 %v1644
  %v1677 = vcvt.s32.f32 %v1645
  %v1678 = vcvt.s32.f32 %v1646
  %v1679 = vcvt.s32.f32 %v1647
  %v1680 = vcvt.s32.f32 %v1648
  %v1681 = vcvt.s32.f32 %v1649
  %v1682 = vcvt.s32.f32 %v1650
  %v1683 = vcvt.s32.f32 %v1651
  %v1684 = vcvt.s32.f32 %v1652
  %v1685 = vcvt.s32.f32 %v1653
  %v1686 = vcvt.s32.f32 %v1654
  %v1687 = vcvt.s32.f32 %v1655
  %v1688 = vcvt.s32.f32 %v1656
  %v1689 = vcvt.s32.f32 %v1657
  %v1690 = vcvt.s32.f32 %v1658
  %v1691 = vcvt.s32.f32 %v1659
  %v1692 = vcvt.s32.f32 %v1660
  %v1693 = vcvt.s32.f32 %v1661
  %v1694 = vcvt.s32.f32 %v1662
  %v1695 = vcvt.s32.f32 %v1663
  %v1696 = vcvt.s32.f32 %v1664
  %v1697 = vcvt.s32.f32 %v1665
  %v1698 = vcvt.s32.f32 %v1666
  %v1699 = vcvt.s32.f32 %v1667
  %v1700 = vmul.f32 %v1668, %v1380
  %v1701 = vmul.f32 %v1669, %v1381
  %v1702 = vmul.f32 %v1670, %v1382
  %v1703 = vmul.f32 %v1671, %v1383
  %v1704 = vmul.f32 %v1672, %v1384
  %v1705 = vmul.f32 %v1673, %v1385
  %v1706 = vmul.f32 %v1674, %v1386
  %v1707 = vmul.f32 %v1675, %v1387
  %v1708 = vmul.f32 %v1676, %v1388
  %v1709 = vmul.f32 %v1677, %v1389
  %v1710 = vmul.f32 %v1678, %v1390
  %v1711 = vmul.f32 %v1679, %v1391
  %v1712 = vmul.f32 %v1680, %v1392
  %v1713 = vmul.f32 %v1681, %v1393
  %v1714 = vmul.f32 %v1682, %v1394
  %v1715 = vmul.f32 %v1683, %v1395
  %v1716 = vmul.f32 %v1684, %v1396
  %v1717 = vmul.f32 %v1685, %v1397
  %v1718 = vmul.f32 %v1686, %v1398
  %v1719 = vmul.f32 %v1687, %v1399
  %v1720 = vmul.f32 %v1688, %v1400
  %v1721 = vmul.f32 %v1689, %v1401
  %v1722 = vmul.f32 %v1690, %v1402
  %v1723 = vmul.f32 %v1691, %v1403
  %v1724 = vmul.f32 %v1692, %v1404
  %v1725 = vmul.f32 %v1693, %v1405
  %v1726 = vmul.f32 %v1694, %v1406
  %v1727 = vmul.f32 %v1695, %v1407
  %v1728 = vmul.f32 %v1696, %v1408
  %v1729 = vmul.f32 %v1697, %v1409
  %v1730 = vmul.f32 %v1698, %v1410
  %v1731 = vmul.f32 %v1699, %v1411
  %1732 = vadd.xlane.f32.xlu0 %v1700
  %v1733 = vpop.xlane.xlu0 %1732
  %1734 = vadd.xlane.f32.xlu0 %v1701
  %v1735 = vpop.xlane.xlu0 %1734
  %1736 = vadd.xlane.f32.xlu0 %v1702
  %v1737 = vpop.xlane.xlu0 %1736
  %1738 = vadd.xlane.f32.xlu0 %v1703
  %v1739 = vpop.xlane.xlu0 %1738
  %1740 = vadd.xlane.f32.xlu0 %v1704
  %v1741 = vpop.xlane.xlu0 %1740
  %1742 = vadd.xlane.f32.xlu0 %v1705
  %v1743 = vpop.xlane.xlu0 %1742
  %1744 = vadd.xlane.f32.xlu0 %v1706
  %v1745 = vpop.xlane.xlu0 %1744
  %1746 = vadd.xlane.f32.xlu0 %v1707
  %v1747 = vpop.xlane.xlu0 %1746
  %1748 = vadd.xlane.f32.xlu0 %v1708
  %v1749 = vpop.xlane.xlu0 %1748
  %1750 = vadd.xlane.f32.xlu0 %v1709
  %v1751 = vpop.xlane.xlu0 %1750
  %1752 = vadd.xlane.f32.xlu0 %v1710
  %v1753 = vpop.xlane.xlu0 %1752
  %1754 = vadd.xlane.f32.xlu0 %v1711
  %v1755 = vpop.xlane.xlu0 %1754
  %1756 = vadd.xlane.f32.xlu0 %v1712
  %v1757 = vpop.xlane.xlu0 %1756
  %1758 = vadd.xlane.f32.xlu0 %v1713
  %v1759 = vpop.xlane.xlu0 %1758
  %1760 = vadd.xlane.f32.xlu0 %v1714
  %v1761 = vpop.xlane.xlu0 %1760
  %1762 = vadd.xlane.f32.xlu0 %v1715
  %v1763 = vpop.xlane.xlu0 %1762
  %1764 = vadd.xlane.f32.xlu0 %v1716
  %v1765 = vpop.xlane.xlu0 %1764
  %1766 = vadd.xlane.f32.xlu0 %v1717
  %v1767 = vpop.xlane.xlu0 %1766
  %1768 = vadd.xlane.f32.xlu0 %v1718
  %v1769 = vpop.xlane.xlu0 %1768
  %1770 = vadd.xlane.f32.xlu0 %v1719
  %v1771 = vpop.xlane.xlu0 %1770
  %1772 = vadd.xlane.f32.xlu0 %v1720
  %v1773 = vpop.xlane.xlu0 %1772
  %1774 = vadd.xlane.f32.xlu0 %v1721
  %v1775 = vpop.xlane.xlu0 %1774
  %1776 = vadd.xlane.f32.xlu0 %v1722
  %v1777 = vpop.xlane.xlu0 %1776
  %1778 = vadd.xlane.f32.xlu0 %v1723
  %v1779 = vpop.xlane.xlu0 %1778
  %1780 = vadd.xlane.f32.xlu0 %v1724
  %v1781 = vpop.xlane.xlu0 %1780
  %1782 = vadd.xlane.f32.xlu0 %v1725
  %v1783 = vpop.xlane.xlu0 %1782
  %1784 = vadd.xlane.f32.xlu0 %v1726
  %v1785 = vpop.xlane.xlu0 %1784
  %1786 = vadd.xlane.f32.xlu0 %v1727
  %v1787 = vpop.xlane.xlu0 %1786
  %1788 = vadd.xlane.f32.xlu0 %v1728
  %v1789 = vpop.xlane.xlu0 %1788
  %1790 = vadd.xlane.f32.xlu0 %v1729
  %v1791 = vpop.xlane.xlu0 %1790
  %1792 = vadd.xlane.f32.xlu0 %v1730
  %v1793 = vpop.xlane.xlu0 %1792
  %1794 = vadd.xlane.f32.xlu0 %v1731
  %v1795 = vpop.xlane.xlu0 %1794
  %v1796 = vsub.f32 0.0, %v1733
  %v1797 = vsub.f32 0.0, %v1735
  %v1798 = vsub.f32 0.0, %v1737
  %v1799 = vsub.f32 0.0, %v1739
  %v1800 = vsub.f32 0.0, %v1741
  %v1801 = vsub.f32 0.0, %v1743
  %v1802 = vsub.f32 0.0, %v1745
  %v1803 = vsub.f32 0.0, %v1747
  %v1804 = vsub.f32 0.0, %v1749
  %v1805 = vsub.f32 0.0, %v1751
  %v1806 = vsub.f32 0.0, %v1753
  %v1807 = vsub.f32 0.0, %v1755
  %v1808 = vsub.f32 0.0, %v1757
  %v1809 = vsub.f32 0.0, %v1759
  %v1810 = vsub.f32 0.0, %v1761
  %v1811 = vsub.f32 0.0, %v1763
  %v1812 = vsub.f32 0.0, %v1765
  %v1813 = vsub.f32 0.0, %v1767
  %v1814 = vsub.f32 0.0, %v1769
  %v1815 = vsub.f32 0.0, %v1771
  %v1816 = vsub.f32 0.0, %v1773
  %v1817 = vsub.f32 0.0, %v1775
  %v1818 = vsub.f32 0.0, %v1777
  %v1819 = vsub.f32 0.0, %v1779
  %v1820 = vsub.f32 0.0, %v1781
  %v1821 = vsub.f32 0.0, %v1783
  %v1822 = vsub.f32 0.0, %v1785
  %v1823 = vsub.f32 0.0, %v1787
  %v1824 = vsub.f32 0.0, %v1789
  %v1825 = vsub.f32 0.0, %v1791
  %v1826 = vsub.f32 0.0, %v1793
  %v1827 = vsub.f32 0.0, %v1795
  %v1828 = vadd.f32 %v1796, %v1797
  %v1829 = vadd.f32 %v1828, %v1798
  %v1830 = vadd.f32 %v1829, %v1799
  %v1831 = vadd.f32 %v1830, %v1800
  %v1832 = vadd.f32 %v1831, %v1801
  %v1833 = vadd.f32 %v1832, %v1802
  %v1834 = vadd.f32 %v1833, %v1803
  %v1835 = vadd.f32 %v1834, %v1804
  %v1836 = vadd.f32 %v1835, %v1805
  %v1837 = vadd.f32 %v1836, %v1806
  %v1838 = vadd.f32 %v1837, %v1807
  %v1839 = vadd.f32 %v1838, %v1808
  %v1840 = vadd.f32 %v1839, %v1809
  %v1841 = vadd.f32 %v1840, %v1810
  %v1842 = vadd.f32 %v1841, %v1811
  %v1843 = vadd.f32 %v1842, %v1812
  %v1844 = vadd.f32 %v1843, %v1813
  %v1845 = vadd.f32 %v1844, %v1814
  %v1846 = vadd.f32 %v1845, %v1815
  %v1847 = vadd.f32 %v1846, %v1816
  %v1848 = vadd.f32 %v1847, %v1817
  %v1849 = vadd.f32 %v1848, %v1818
  %v1850 = vadd.f32 %v1849, %v1819
  %v1851 = vadd.f32 %v1850, %v1820
  %v1852 = vadd.f32 %v1851, %v1821
  %v1853 = vadd.f32 %v1852, %v1822
  %v1854 = vadd.f32 %v1853, %v1823
  %v1855 = vadd.f32 %v1854, %v1824
  %v1856 = vadd.f32 %v1855, %v1825
  %v1857 = vadd.f32 %v1856, %v1826
  %v1858 = vadd.f32 %v1857, %v1827
  %v1859 = vrot.slane %v1858, 4
  %v1860 = vadd.f32 %v1858, %v1859
  %v1861 = vrot.slane %v1860, 2
  %v1862 = vadd.f32 %v1860, %v1861
  %v1863 = vrot.slane %v1862, 1
  %v1864 = vadd.f32 %v1862, %v1863
  %1865 = vmax.xlane.f32.xlu0 %v1380
  %v1866 = vpop.xlane.xlu0 %1865
  %1867 = vmax.xlane.f32.xlu0 %v1381
  %v1868 = vpop.xlane.xlu0 %1867
  %1869 = vmax.xlane.f32.xlu0 %v1382
  %v1870 = vpop.xlane.xlu0 %1869
  %1871 = vmax.xlane.f32.xlu0 %v1383
  %v1872 = vpop.xlane.xlu0 %1871
  %1873 = vmax.xlane.f32.xlu0 %v1384
  %v1874 = vpop.xlane.xlu0 %1873
  %1875 = vmax.xlane.f32.xlu0 %v1385
  %v1876 = vpop.xlane.xlu0 %1875
  %1877 = vmax.xlane.f32.xlu0 %v1386
  %v1878 = vpop.xlane.xlu0 %1877
  %1879 = vmax.xlane.f32.xlu0 %v1387
  %v1880 = vpop.xlane.xlu0 %1879
  %1881 = vmax.xlane.f32.xlu0 %v1388
  %v1882 = vpop.xlane.xlu0 %1881
  %1883 = vmax.xlane.f32.xlu0 %v1389
  %v1884 = vpop.xlane.xlu0 %1883
  %1885 = vmax.xlane.f32.xlu0 %v1390
  %v1886 = vpop.xlane.xlu0 %1885
  %1887 = vmax.xlane.f32.xlu0 %v1391
  %v1888 = vpop.xlane.xlu0 %1887
  %1889 = vmax.xlane.f32.xlu0 %v1392
  %v1890 = vpop.xlane.xlu0 %1889
  %1891 = vmax.xlane.f32.xlu0 %v1393
  %v1892 = vpop.xlane.xlu0 %1891
  %1893 = vmax.xlane.f32.xlu0 %v1394
  %v1894 = vpop.xlane.xlu0 %1893
  %1895 = vmax.xlane.f32.xlu0 %v1395
  %v1896 = vpop.xlane.xlu0 %1895
  %1897 = vmax.xlane.f32.xlu0 %v1396
  %v1898 = vpop.xlane.xlu0 %1897
  %1899 = vmax.xlane.f32.xlu0 %v1397
  %v1900 = vpop.xlane.xlu0 %1899
  %1901 = vmax.xlane.f32.xlu0 %v1398
  %v1902 = vpop.xlane.xlu0 %1901
  %1903 = vmax.xlane.f32.xlu0 %v1399
  %v1904 = vpop.xlane.xlu0 %1903
  %1905 = vmax.xlane.f32.xlu0 %v1400
  %v1906 = vpop.xlane.xlu0 %1905
  %1907 = vmax.xlane.f32.xlu0 %v1401
  %v1908 = vpop.xlane.xlu0 %1907
  %1909 = vmax.xlane.f32.xlu0 %v1402
  %v1910 = vpop.xlane.xlu0 %1909
  %1911 = vmax.xlane.f32.xlu0 %v1403
  %v1912 = vpop.xlane.xlu0 %1911
  %1913 = vmax.xlane.f32.xlu0 %v1404
  %v1914 = vpop.xlane.xlu0 %1913
  %1915 = vmax.xlane.f32.xlu0 %v1405
  %v1916 = vpop.xlane.xlu0 %1915
  %1917 = vmax.xlane.f32.xlu0 %v1406
  %v1918 = vpop.xlane.xlu0 %1917
  %1919 = vmax.xlane.f32.xlu0 %v1407
  %v1920 = vpop.xlane.xlu0 %1919
  %1921 = vmax.xlane.f32.xlu0 %v1408
  %v1922 = vpop.xlane.xlu0 %1921
  %1923 = vmax.xlane.f32.xlu0 %v1409
  %v1924 = vpop.xlane.xlu0 %1923
  %1925 = vmax.xlane.f32.xlu0 %v1410
  %v1926 = vpop.xlane.xlu0 %1925
  %1927 = vmax.xlane.f32.xlu0 %v1411
  %v1928 = vpop.xlane.xlu0 %1927
  %vm1929 = vcmp.eq.f32.partialorder %v1380, %v1866
  %vm1930 = vcmp.eq.f32.partialorder %v1381, %v1868
  %vm1931 = vcmp.eq.f32.partialorder %v1382, %v1870
  %vm1932 = vcmp.eq.f32.partialorder %v1383, %v1872
  %vm1933 = vcmp.eq.f32.partialorder %v1384, %v1874
  %vm1934 = vcmp.eq.f32.partialorder %v1385, %v1876
  %vm1935 = vcmp.eq.f32.partialorder %v1386, %v1878
  %vm1936 = vcmp.eq.f32.partialorder %v1387, %v1880
  %vm1937 = vcmp.eq.f32.partialorder %v1388, %v1882
  %vm1938 = vcmp.eq.f32.partialorder %v1389, %v1884
  %vm1939 = vcmp.eq.f32.partialorder %v1390, %v1886
  %vm1940 = vcmp.eq.f32.partialorder %v1391, %v1888
  %vm1941 = vcmp.eq.f32.partialorder %v1392, %v1890
  %vm1942 = vcmp.eq.f32.partialorder %v1393, %v1892
  %vm1943 = vcmp.eq.f32.partialorder %v1394, %v1894
  %vm1944 = vcmp.eq.f32.partialorder %v1395, %v1896
  %vm1945 = vcmp.eq.f32.partialorder %v1396, %v1898
  %vm1946 = vcmp.eq.f32.partialorder %v1397, %v1900
  %vm1947 = vcmp.eq.f32.partialorder %v1398, %v1902
  %vm1948 = vcmp.eq.f32.partialorder %v1399, %v1904
  %vm1949 = vcmp.eq.f32.partialorder %v1400, %v1906
  %vm1950 = vcmp.eq.f32.partialorder %v1401, %v1908
  %vm1951 = vcmp.eq.f32.partialorder %v1402, %v1910
  %vm1952 = vcmp.eq.f32.partialorder %v1403, %v1912
  %vm1953 = vcmp.eq.f32.partialorder %v1404, %v1914
  %vm1954 = vcmp.eq.f32.partialorder %v1405, %v1916
  %vm1955 = vcmp.eq.f32.partialorder %v1406, %v1918
  %vm1956 = vcmp.eq.f32.partialorder %v1407, %v1920
  %vm1957 = vcmp.eq.f32.partialorder %v1408, %v1922
  %vm1958 = vcmp.eq.f32.partialorder %v1409, %v1924
  %vm1959 = vcmp.eq.f32.partialorder %v1410, %v1926
  %vm1960 = vcmp.eq.f32.partialorder %v1411, %v1928
  %v1961 = vsel %vm1929, %v1026, 128
  %v1962 = vsel %vm1930, %v1026, 128
  %v1963 = vsel %vm1931, %v1026, 128
  %v1964 = vsel %vm1932, %v1026, 128
  %v1965 = vsel %vm1933, %v1026, 128
  %v1966 = vsel %vm1934, %v1026, 128
  %v1967 = vsel %vm1935, %v1026, 128
  %v1968 = vsel %vm1936, %v1026, 128
  %v1969 = vsel %vm1937, %v1026, 128
  %v1970 = vsel %vm1938, %v1026, 128
  %v1971 = vsel %vm1939, %v1026, 128
  %v1972 = vsel %vm1940, %v1026, 128
  %v1973 = vsel %vm1941, %v1026, 128
  %v1974 = vsel %vm1942, %v1026, 128
  %v1975 = vsel %vm1943, %v1026, 128
  %v1976 = vsel %vm1944, %v1026, 128
  %v1977 = vsel %vm1945, %v1026, 128
  %v1978 = vsel %vm1946, %v1026, 128
  %v1979 = vsel %vm1947, %v1026, 128
  %v1980 = vsel %vm1948, %v1026, 128
  %v1981 = vsel %vm1949, %v1026, 128
  %v1982 = vsel %vm1950, %v1026, 128
  %v1983 = vsel %vm1951, %v1026, 128
  %v1984 = vsel %vm1952, %v1026, 128
  %v1985 = vsel %vm1953, %v1026, 128
  %v1986 = vsel %vm1954, %v1026, 128
  %v1987 = vsel %vm1955, %v1026, 128
  %v1988 = vsel %vm1956, %v1026, 128
  %v1989 = vsel %vm1957, %v1026, 128
  %v1990 = vsel %vm1958, %v1026, 128
  %v1991 = vsel %vm1959, %v1026, 128
  %v1992 = vsel %vm1960, %v1026, 128
  %v1993 = vand.u32 %v1961, 65535
  %v1994 = vshra.s32 %v1961, 16
  %v1995 = vcvt.s32.f32 %v1993
  %v1996 = vcvt.s32.f32 %v1994
  %1997 = vmin.xlane.f32.xlu0 %v1996
  %v1998 = vpop.xlane.xlu0 %1997
  %vm1999 = vcmp.eq.f32.partialorder %v1996, %v1998
  %v2000 = vsel %vm1999, %v1995, inf
  %2001 = vmin.xlane.f32.xlu0 %v2000
  %v2002 = vpop.xlane.xlu0 %2001
  %v2003 = vcvt.f32.s32 %v2002
  %v2004 = vcvt.f32.s32 %v1998
  %v2005 = vshll.u32 %v2004, 16
  %v2006 = vadd.s32 %v2005, %v2003
  %v2007 = vand.u32 %v1962, 65535
  %v2008 = vshra.s32 %v1962, 16
  %v2009 = vcvt.s32.f32 %v2007
  %v2010 = vcvt.s32.f32 %v2008
  %2011 = vmin.xlane.f32.xlu0 %v2010
  %v2012 = vpop.xlane.xlu0 %2011
  %vm2013 = vcmp.eq.f32.partialorder %v2010, %v2012
  %v2014 = vsel %vm2013, %v2009, inf
  %2015 = vmin.xlane.f32.xlu0 %v2014
  %v2016 = vpop.xlane.xlu0 %2015
  %v2017 = vcvt.f32.s32 %v2016
  %v2018 = vcvt.f32.s32 %v2012
  %v2019 = vshll.u32 %v2018, 16
  %v2020 = vadd.s32 %v2019, %v2017
  %v2021 = vand.u32 %v1963, 65535
  %v2022 = vshra.s32 %v1963, 16
  %v2023 = vcvt.s32.f32 %v2021
  %v2024 = vcvt.s32.f32 %v2022
  %2025 = vmin.xlane.f32.xlu0 %v2024
  %v2026 = vpop.xlane.xlu0 %2025
  %vm2027 = vcmp.eq.f32.partialorder %v2024, %v2026
  %v2028 = vsel %vm2027, %v2023, inf
  %2029 = vmin.xlane.f32.xlu0 %v2028
  %v2030 = vpop.xlane.xlu0 %2029
  %v2031 = vcvt.f32.s32 %v2030
  %v2032 = vcvt.f32.s32 %v2026
  %v2033 = vshll.u32 %v2032, 16
  %v2034 = vadd.s32 %v2033, %v2031
  %v2035 = vand.u32 %v1964, 65535
  %v2036 = vshra.s32 %v1964, 16
  %v2037 = vcvt.s32.f32 %v2035
  %v2038 = vcvt.s32.f32 %v2036
  %2039 = vmin.xlane.f32.xlu0 %v2038
  %v2040 = vpop.xlane.xlu0 %2039
  %vm2041 = vcmp.eq.f32.partialorder %v2038, %v2040
  %v2042 = vsel %vm2041, %v2037, inf
  %2043 = vmin.xlane.f32.xlu0 %v2042
  %v2044 = vpop.xlane.xlu0 %2043
  %v2045 = vcvt.f32.s32 %v2044
  %v2046 = vcvt.f32.s32 %v2040
  %v2047 = vshll.u32 %v2046, 16
  %v2048 = vadd.s32 %v2047, %v2045
  %v2049 = vand.u32 %v1965, 65535
  %v2050 = vshra.s32 %v1965, 16
  %v2051 = vcvt.s32.f32 %v2049
  %v2052 = vcvt.s32.f32 %v2050
  %2053 = vmin.xlane.f32.xlu0 %v2052
  %v2054 = vpop.xlane.xlu0 %2053
  %vm2055 = vcmp.eq.f32.partialorder %v2052, %v2054
  %v2056 = vsel %vm2055, %v2051, inf
  %2057 = vmin.xlane.f32.xlu0 %v2056
  %v2058 = vpop.xlane.xlu0 %2057
  %v2059 = vcvt.f32.s32 %v2058
  %v2060 = vcvt.f32.s32 %v2054
  %v2061 = vshll.u32 %v2060, 16
  %v2062 = vadd.s32 %v2061, %v2059
  %v2063 = vand.u32 %v1966, 65535
  %v2064 = vshra.s32 %v1966, 16
  %v2065 = vcvt.s32.f32 %v2063
  %v2066 = vcvt.s32.f32 %v2064
  %2067 = vmin.xlane.f32.xlu0 %v2066
  %v2068 = vpop.xlane.xlu0 %2067
  %vm2069 = vcmp.eq.f32.partialorder %v2066, %v2068
  %v2070 = vsel %vm2069, %v2065, inf
  %2071 = vmin.xlane.f32.xlu0 %v2070
  %v2072 = vpop.xlane.xlu0 %2071
  %v2073 = vcvt.f32.s32 %v2072
  %v2074 = vcvt.f32.s32 %v2068
  %v2075 = vshll.u32 %v2074, 16
  %v2076 = vadd.s32 %v2075, %v2073
  %v2077 = vand.u32 %v1967, 65535
  %v2078 = vshra.s32 %v1967, 16
  %v2079 = vcvt.s32.f32 %v2077
  %v2080 = vcvt.s32.f32 %v2078
  %2081 = vmin.xlane.f32.xlu0 %v2080
  %v2082 = vpop.xlane.xlu0 %2081
  %vm2083 = vcmp.eq.f32.partialorder %v2080, %v2082
  %v2084 = vsel %vm2083, %v2079, inf
  %2085 = vmin.xlane.f32.xlu0 %v2084
  %v2086 = vpop.xlane.xlu0 %2085
  %v2087 = vcvt.f32.s32 %v2086
  %v2088 = vcvt.f32.s32 %v2082
  %v2089 = vshll.u32 %v2088, 16
  %v2090 = vadd.s32 %v2089, %v2087
  %v2091 = vand.u32 %v1968, 65535
  %v2092 = vshra.s32 %v1968, 16
  %v2093 = vcvt.s32.f32 %v2091
  %v2094 = vcvt.s32.f32 %v2092
  %2095 = vmin.xlane.f32.xlu0 %v2094
  %v2096 = vpop.xlane.xlu0 %2095
  %vm2097 = vcmp.eq.f32.partialorder %v2094, %v2096
  %v2098 = vsel %vm2097, %v2093, inf
  %2099 = vmin.xlane.f32.xlu0 %v2098
  %v2100 = vpop.xlane.xlu0 %2099
  %v2101 = vcvt.f32.s32 %v2100
  %v2102 = vcvt.f32.s32 %v2096
  %v2103 = vshll.u32 %v2102, 16
  %v2104 = vadd.s32 %v2103, %v2101
  %v2105 = vand.u32 %v1969, 65535
  %v2106 = vshra.s32 %v1969, 16
  %v2107 = vcvt.s32.f32 %v2105
  %v2108 = vcvt.s32.f32 %v2106
  %2109 = vmin.xlane.f32.xlu0 %v2108
  %v2110 = vpop.xlane.xlu0 %2109
  %vm2111 = vcmp.eq.f32.partialorder %v2108, %v2110
  %v2112 = vsel %vm2111, %v2107, inf
  %2113 = vmin.xlane.f32.xlu0 %v2112
  %v2114 = vpop.xlane.xlu0 %2113
  %v2115 = vcvt.f32.s32 %v2114
  %v2116 = vcvt.f32.s32 %v2110
  %v2117 = vshll.u32 %v2116, 16
  %v2118 = vadd.s32 %v2117, %v2115
  %v2119 = vand.u32 %v1970, 65535
  %v2120 = vshra.s32 %v1970, 16
  %v2121 = vcvt.s32.f32 %v2119
  %v2122 = vcvt.s32.f32 %v2120
  %2123 = vmin.xlane.f32.xlu0 %v2122
  %v2124 = vpop.xlane.xlu0 %2123
  %vm2125 = vcmp.eq.f32.partialorder %v2122, %v2124
  %v2126 = vsel %vm2125, %v2121, inf
  %2127 = vmin.xlane.f32.xlu0 %v2126
  %v2128 = vpop.xlane.xlu0 %2127
  %v2129 = vcvt.f32.s32 %v2128
  %v2130 = vcvt.f32.s32 %v2124
  %v2131 = vshll.u32 %v2130, 16
  %v2132 = vadd.s32 %v2131, %v2129
  %v2133 = vand.u32 %v1971, 65535
  %v2134 = vshra.s32 %v1971, 16
  %v2135 = vcvt.s32.f32 %v2133
  %v2136 = vcvt.s32.f32 %v2134
  %2137 = vmin.xlane.f32.xlu0 %v2136
  %v2138 = vpop.xlane.xlu0 %2137
  %vm2139 = vcmp.eq.f32.partialorder %v2136, %v2138
  %v2140 = vsel %vm2139, %v2135, inf
  %2141 = vmin.xlane.f32.xlu0 %v2140
  %v2142 = vpop.xlane.xlu0 %2141
  %v2143 = vcvt.f32.s32 %v2142
  %v2144 = vcvt.f32.s32 %v2138
  %v2145 = vshll.u32 %v2144, 16
  %v2146 = vadd.s32 %v2145, %v2143
  %v2147 = vand.u32 %v1972, 65535
  %v2148 = vshra.s32 %v1972, 16
  %v2149 = vcvt.s32.f32 %v2147
  %v2150 = vcvt.s32.f32 %v2148
  %2151 = vmin.xlane.f32.xlu0 %v2150
  %v2152 = vpop.xlane.xlu0 %2151
  %vm2153 = vcmp.eq.f32.partialorder %v2150, %v2152
  %v2154 = vsel %vm2153, %v2149, inf
  %2155 = vmin.xlane.f32.xlu0 %v2154
  %v2156 = vpop.xlane.xlu0 %2155
  %v2157 = vcvt.f32.s32 %v2156
  %v2158 = vcvt.f32.s32 %v2152
  %v2159 = vshll.u32 %v2158, 16
  %v2160 = vadd.s32 %v2159, %v2157
  %v2161 = vand.u32 %v1973, 65535
  %v2162 = vshra.s32 %v1973, 16
  %v2163 = vcvt.s32.f32 %v2161
  %v2164 = vcvt.s32.f32 %v2162
  %2165 = vmin.xlane.f32.xlu0 %v2164
  %v2166 = vpop.xlane.xlu0 %2165
  %vm2167 = vcmp.eq.f32.partialorder %v2164, %v2166
  %v2168 = vsel %vm2167, %v2163, inf
  %2169 = vmin.xlane.f32.xlu0 %v2168
  %v2170 = vpop.xlane.xlu0 %2169
  %v2171 = vcvt.f32.s32 %v2170
  %v2172 = vcvt.f32.s32 %v2166
  %v2173 = vshll.u32 %v2172, 16
  %v2174 = vadd.s32 %v2173, %v2171
  %v2175 = vand.u32 %v1974, 65535
  %v2176 = vshra.s32 %v1974, 16
  %v2177 = vcvt.s32.f32 %v2175
  %v2178 = vcvt.s32.f32 %v2176
  %2179 = vmin.xlane.f32.xlu0 %v2178
  %v2180 = vpop.xlane.xlu0 %2179
  %vm2181 = vcmp.eq.f32.partialorder %v2178, %v2180
  %v2182 = vsel %vm2181, %v2177, inf
  %2183 = vmin.xlane.f32.xlu0 %v2182
  %v2184 = vpop.xlane.xlu0 %2183
  %v2185 = vcvt.f32.s32 %v2184
  %v2186 = vcvt.f32.s32 %v2180
  %v2187 = vshll.u32 %v2186, 16
  %v2188 = vadd.s32 %v2187, %v2185
  %v2189 = vand.u32 %v1975, 65535
  %v2190 = vshra.s32 %v1975, 16
  %v2191 = vcvt.s32.f32 %v2189
  %v2192 = vcvt.s32.f32 %v2190
  %2193 = vmin.xlane.f32.xlu0 %v2192
  %v2194 = vpop.xlane.xlu0 %2193
  %vm2195 = vcmp.eq.f32.partialorder %v2192, %v2194
  %v2196 = vsel %vm2195, %v2191, inf
  %2197 = vmin.xlane.f32.xlu0 %v2196
  %v2198 = vpop.xlane.xlu0 %2197
  %v2199 = vcvt.f32.s32 %v2198
  %v2200 = vcvt.f32.s32 %v2194
  %v2201 = vshll.u32 %v2200, 16
  %v2202 = vadd.s32 %v2201, %v2199
  %v2203 = vand.u32 %v1976, 65535
  %v2204 = vshra.s32 %v1976, 16
  %v2205 = vcvt.s32.f32 %v2203
  %v2206 = vcvt.s32.f32 %v2204
  %2207 = vmin.xlane.f32.xlu0 %v2206
  %v2208 = vpop.xlane.xlu0 %2207
  %vm2209 = vcmp.eq.f32.partialorder %v2206, %v2208
  %v2210 = vsel %vm2209, %v2205, inf
  %2211 = vmin.xlane.f32.xlu0 %v2210
  %v2212 = vpop.xlane.xlu0 %2211
  %v2213 = vcvt.f32.s32 %v2212
  %v2214 = vcvt.f32.s32 %v2208
  %v2215 = vshll.u32 %v2214, 16
  %v2216 = vadd.s32 %v2215, %v2213
  %v2217 = vand.u32 %v1977, 65535
  %v2218 = vshra.s32 %v1977, 16
  %v2219 = vcvt.s32.f32 %v2217
  %v2220 = vcvt.s32.f32 %v2218
  %2221 = vmin.xlane.f32.xlu0 %v2220
  %v2222 = vpop.xlane.xlu0 %2221
  %vm2223 = vcmp.eq.f32.partialorder %v2220, %v2222
  %v2224 = vsel %vm2223, %v2219, inf
  %2225 = vmin.xlane.f32.xlu0 %v2224
  %v2226 = vpop.xlane.xlu0 %2225
  %v2227 = vcvt.f32.s32 %v2226
  %v2228 = vcvt.f32.s32 %v2222
  %v2229 = vshll.u32 %v2228, 16
  %v2230 = vadd.s32 %v2229, %v2227
  %v2231 = vand.u32 %v1978, 65535
  %v2232 = vshra.s32 %v1978, 16
  %v2233 = vcvt.s32.f32 %v2231
  %v2234 = vcvt.s32.f32 %v2232
  %2235 = vmin.xlane.f32.xlu0 %v2234
  %v2236 = vpop.xlane.xlu0 %2235
  %vm2237 = vcmp.eq.f32.partialorder %v2234, %v2236
  %v2238 = vsel %vm2237, %v2233, inf
  %2239 = vmin.xlane.f32.xlu0 %v2238
  %v2240 = vpop.xlane.xlu0 %2239
  %v2241 = vcvt.f32.s32 %v2240
  %v2242 = vcvt.f32.s32 %v2236
  %v2243 = vshll.u32 %v2242, 16
  %v2244 = vadd.s32 %v2243, %v2241
  %v2245 = vand.u32 %v1979, 65535
  %v2246 = vshra.s32 %v1979, 16
  %v2247 = vcvt.s32.f32 %v2245
  %v2248 = vcvt.s32.f32 %v2246
  %2249 = vmin.xlane.f32.xlu0 %v2248
  %v2250 = vpop.xlane.xlu0 %2249
  %vm2251 = vcmp.eq.f32.partialorder %v2248, %v2250
  %v2252 = vsel %vm2251, %v2247, inf
  %2253 = vmin.xlane.f32.xlu0 %v2252
  %v2254 = vpop.xlane.xlu0 %2253
  %v2255 = vcvt.f32.s32 %v2254
  %v2256 = vcvt.f32.s32 %v2250
  %v2257 = vshll.u32 %v2256, 16
  %v2258 = vadd.s32 %v2257, %v2255
  %v2259 = vand.u32 %v1980, 65535
  %v2260 = vshra.s32 %v1980, 16
  %v2261 = vcvt.s32.f32 %v2259
  %v2262 = vcvt.s32.f32 %v2260
  %2263 = vmin.xlane.f32.xlu0 %v2262
  %v2264 = vpop.xlane.xlu0 %2263
  %vm2265 = vcmp.eq.f32.partialorder %v2262, %v2264
  %v2266 = vsel %vm2265, %v2261, inf
  %2267 = vmin.xlane.f32.xlu0 %v2266
  %v2268 = vpop.xlane.xlu0 %2267
  %v2269 = vcvt.f32.s32 %v2268
  %v2270 = vcvt.f32.s32 %v2264
  %v2271 = vshll.u32 %v2270, 16
  %v2272 = vadd.s32 %v2271, %v2269
  %v2273 = vand.u32 %v1981, 65535
  %v2274 = vshra.s32 %v1981, 16
  %v2275 = vcvt.s32.f32 %v2273
  %v2276 = vcvt.s32.f32 %v2274
  %2277 = vmin.xlane.f32.xlu0 %v2276
  %v2278 = vpop.xlane.xlu0 %2277
  %vm2279 = vcmp.eq.f32.partialorder %v2276, %v2278
  %v2280 = vsel %vm2279, %v2275, inf
  %2281 = vmin.xlane.f32.xlu0 %v2280
  %v2282 = vpop.xlane.xlu0 %2281
  %v2283 = vcvt.f32.s32 %v2282
  %v2284 = vcvt.f32.s32 %v2278
  %v2285 = vshll.u32 %v2284, 16
  %v2286 = vadd.s32 %v2285, %v2283
  %v2287 = vand.u32 %v1982, 65535
  %v2288 = vshra.s32 %v1982, 16
  %v2289 = vcvt.s32.f32 %v2287
  %v2290 = vcvt.s32.f32 %v2288
  %2291 = vmin.xlane.f32.xlu0 %v2290
  %v2292 = vpop.xlane.xlu0 %2291
  %vm2293 = vcmp.eq.f32.partialorder %v2290, %v2292
  %v2294 = vsel %vm2293, %v2289, inf
  %2295 = vmin.xlane.f32.xlu0 %v2294
  %v2296 = vpop.xlane.xlu0 %2295
  %v2297 = vcvt.f32.s32 %v2296
  %v2298 = vcvt.f32.s32 %v2292
  %v2299 = vshll.u32 %v2298, 16
  %v2300 = vadd.s32 %v2299, %v2297
  %v2301 = vand.u32 %v1983, 65535
  %v2302 = vshra.s32 %v1983, 16
  %v2303 = vcvt.s32.f32 %v2301
  %v2304 = vcvt.s32.f32 %v2302
  %2305 = vmin.xlane.f32.xlu0 %v2304
  %v2306 = vpop.xlane.xlu0 %2305
  %vm2307 = vcmp.eq.f32.partialorder %v2304, %v2306
  %v2308 = vsel %vm2307, %v2303, inf
  %2309 = vmin.xlane.f32.xlu0 %v2308
  %v2310 = vpop.xlane.xlu0 %2309
  %v2311 = vcvt.f32.s32 %v2310
  %v2312 = vcvt.f32.s32 %v2306
  %v2313 = vshll.u32 %v2312, 16
  %v2314 = vadd.s32 %v2313, %v2311
  %v2315 = vand.u32 %v1984, 65535
  %v2316 = vshra.s32 %v1984, 16
  %v2317 = vcvt.s32.f32 %v2315
  %v2318 = vcvt.s32.f32 %v2316
  %2319 = vmin.xlane.f32.xlu0 %v2318
  %v2320 = vpop.xlane.xlu0 %2319
  %vm2321 = vcmp.eq.f32.partialorder %v2318, %v2320
  %v2322 = vsel %vm2321, %v2317, inf
  %2323 = vmin.xlane.f32.xlu0 %v2322
  %v2324 = vpop.xlane.xlu0 %2323
  %v2325 = vcvt.f32.s32 %v2324
  %v2326 = vcvt.f32.s32 %v2320
  %v2327 = vshll.u32 %v2326, 16
  %v2328 = vadd.s32 %v2327, %v2325
  %v2329 = vand.u32 %v1985, 65535
  %v2330 = vshra.s32 %v1985, 16
  %v2331 = vcvt.s32.f32 %v2329
  %v2332 = vcvt.s32.f32 %v2330
  %2333 = vmin.xlane.f32.xlu0 %v2332
  %v2334 = vpop.xlane.xlu0 %2333
  %vm2335 = vcmp.eq.f32.partialorder %v2332, %v2334
  %v2336 = vsel %vm2335, %v2331, inf
  %2337 = vmin.xlane.f32.xlu0 %v2336
  %v2338 = vpop.xlane.xlu0 %2337
  %v2339 = vcvt.f32.s32 %v2338
  %v2340 = vcvt.f32.s32 %v2334
  %v2341 = vshll.u32 %v2340, 16
  %v2342 = vadd.s32 %v2341, %v2339
  %v2343 = vand.u32 %v1986, 65535
  %v2344 = vshra.s32 %v1986, 16
  %v2345 = vcvt.s32.f32 %v2343
  %v2346 = vcvt.s32.f32 %v2344
  %2347 = vmin.xlane.f32.xlu0 %v2346
  %v2348 = vpop.xlane.xlu0 %2347
  %vm2349 = vcmp.eq.f32.partialorder %v2346, %v2348
  %v2350 = vsel %vm2349, %v2345, inf
  %2351 = vmin.xlane.f32.xlu0 %v2350
  %v2352 = vpop.xlane.xlu0 %2351
  %v2353 = vcvt.f32.s32 %v2352
  %v2354 = vcvt.f32.s32 %v2348
  %v2355 = vshll.u32 %v2354, 16
  %v2356 = vadd.s32 %v2355, %v2353
  %v2357 = vand.u32 %v1987, 65535
  %v2358 = vshra.s32 %v1987, 16
  %v2359 = vcvt.s32.f32 %v2357
  %v2360 = vcvt.s32.f32 %v2358
  %2361 = vmin.xlane.f32.xlu0 %v2360
  %v2362 = vpop.xlane.xlu0 %2361
  %vm2363 = vcmp.eq.f32.partialorder %v2360, %v2362
  %v2364 = vsel %vm2363, %v2359, inf
  %2365 = vmin.xlane.f32.xlu0 %v2364
  %v2366 = vpop.xlane.xlu0 %2365
  %v2367 = vcvt.f32.s32 %v2366
  %v2368 = vcvt.f32.s32 %v2362
  %v2369 = vshll.u32 %v2368, 16
  %v2370 = vadd.s32 %v2369, %v2367
  %v2371 = vand.u32 %v1988, 65535
  %v2372 = vshra.s32 %v1988, 16
  %v2373 = vcvt.s32.f32 %v2371
  %v2374 = vcvt.s32.f32 %v2372
  %2375 = vmin.xlane.f32.xlu0 %v2374
  %v2376 = vpop.xlane.xlu0 %2375
  %vm2377 = vcmp.eq.f32.partialorder %v2374, %v2376
  %v2378 = vsel %vm2377, %v2373, inf
  %2379 = vmin.xlane.f32.xlu0 %v2378
  %v2380 = vpop.xlane.xlu0 %2379
  %v2381 = vcvt.f32.s32 %v2380
  %v2382 = vcvt.f32.s32 %v2376
  %v2383 = vshll.u32 %v2382, 16
  %v2384 = vadd.s32 %v2383, %v2381
  %v2385 = vand.u32 %v1989, 65535
  %v2386 = vshra.s32 %v1989, 16
  %v2387 = vcvt.s32.f32 %v2385
  %v2388 = vcvt.s32.f32 %v2386
  %2389 = vmin.xlane.f32.xlu0 %v2388
  %v2390 = vpop.xlane.xlu0 %2389
  %vm2391 = vcmp.eq.f32.partialorder %v2388, %v2390
  %v2392 = vsel %vm2391, %v2387, inf
  %2393 = vmin.xlane.f32.xlu0 %v2392
  %v2394 = vpop.xlane.xlu0 %2393
  %v2395 = vcvt.f32.s32 %v2394
  %v2396 = vcvt.f32.s32 %v2390
  %v2397 = vshll.u32 %v2396, 16
  %v2398 = vadd.s32 %v2397, %v2395
  %v2399 = vand.u32 %v1990, 65535
  %v2400 = vshra.s32 %v1990, 16
  %v2401 = vcvt.s32.f32 %v2399
  %v2402 = vcvt.s32.f32 %v2400
  %2403 = vmin.xlane.f32.xlu0 %v2402
  %v2404 = vpop.xlane.xlu0 %2403
  %vm2405 = vcmp.eq.f32.partialorder %v2402, %v2404
  %v2406 = vsel %vm2405, %v2401, inf
  %2407 = vmin.xlane.f32.xlu0 %v2406
  %v2408 = vpop.xlane.xlu0 %2407
  %v2409 = vcvt.f32.s32 %v2408
  %v2410 = vcvt.f32.s32 %v2404
  %v2411 = vshll.u32 %v2410, 16
  %v2412 = vadd.s32 %v2411, %v2409
  %v2413 = vand.u32 %v1991, 65535
  %v2414 = vshra.s32 %v1991, 16
  %v2415 = vcvt.s32.f32 %v2413
  %v2416 = vcvt.s32.f32 %v2414
  %2417 = vmin.xlane.f32.xlu0 %v2416
  %v2418 = vpop.xlane.xlu0 %2417
  %vm2419 = vcmp.eq.f32.partialorder %v2416, %v2418
  %v2420 = vsel %vm2419, %v2415, inf
  %2421 = vmin.xlane.f32.xlu0 %v2420
  %v2422 = vpop.xlane.xlu0 %2421
  %v2423 = vcvt.f32.s32 %v2422
  %v2424 = vcvt.f32.s32 %v2418
  %v2425 = vshll.u32 %v2424, 16
  %v2426 = vadd.s32 %v2425, %v2423
  %v2427 = vand.u32 %v1992, 65535
  %v2428 = vshra.s32 %v1992, 16
  %v2429 = vcvt.s32.f32 %v2427
  %v2430 = vcvt.s32.f32 %v2428
  %2431 = vmin.xlane.f32.xlu0 %v2430
  %v2432 = vpop.xlane.xlu0 %2431
  %vm2433 = vcmp.eq.f32.partialorder %v2430, %v2432
  %v2434 = vsel %vm2433, %v2429, inf
  %2435 = vmin.xlane.f32.xlu0 %v2434
  %v2436 = vpop.xlane.xlu0 %2435
  %v2437 = vcvt.f32.s32 %v2436
  %v2438 = vcvt.f32.s32 %v2432
  %v2439 = vshll.u32 %v2438, 16
  %v2440 = vadd.s32 %v2439, %v2437
  %vm2441 = vcmp.eq.s32.totalorder %v2006, %v1476
  %vm2442 = vcmp.eq.s32.totalorder %v2020, %v1477
  %vm2443 = vcmp.eq.s32.totalorder %v2034, %v1478
  %vm2444 = vcmp.eq.s32.totalorder %v2048, %v1479
  %vm2445 = vcmp.eq.s32.totalorder %v2062, %v1480
  %vm2446 = vcmp.eq.s32.totalorder %v2076, %v1481
  %vm2447 = vcmp.eq.s32.totalorder %v2090, %v1482
  %vm2448 = vcmp.eq.s32.totalorder %v2104, %v1483
  %vm2449 = vcmp.eq.s32.totalorder %v2118, %v1484
  %vm2450 = vcmp.eq.s32.totalorder %v2132, %v1485
  %vm2451 = vcmp.eq.s32.totalorder %v2146, %v1486
  %vm2452 = vcmp.eq.s32.totalorder %v2160, %v1487
  %vm2453 = vcmp.eq.s32.totalorder %v2174, %v1488
  %vm2454 = vcmp.eq.s32.totalorder %v2188, %v1489
  %vm2455 = vcmp.eq.s32.totalorder %v2202, %v1490
  %vm2456 = vcmp.eq.s32.totalorder %v2216, %v1491
  %vm2457 = vcmp.eq.s32.totalorder %v2230, %v1492
  %vm2458 = vcmp.eq.s32.totalorder %v2244, %v1493
  %vm2459 = vcmp.eq.s32.totalorder %v2258, %v1494
  %vm2460 = vcmp.eq.s32.totalorder %v2272, %v1495
  %vm2461 = vcmp.eq.s32.totalorder %v2286, %v1496
  %vm2462 = vcmp.eq.s32.totalorder %v2300, %v1497
  %vm2463 = vcmp.eq.s32.totalorder %v2314, %v1498
  %vm2464 = vcmp.eq.s32.totalorder %v2328, %v1499
  %vm2465 = vcmp.eq.s32.totalorder %v2342, %v1500
  %vm2466 = vcmp.eq.s32.totalorder %v2356, %v1501
  %vm2467 = vcmp.eq.s32.totalorder %v2370, %v1502
  %vm2468 = vcmp.eq.s32.totalorder %v2384, %v1503
  %vm2469 = vcmp.eq.s32.totalorder %v2398, %v1504
  %vm2470 = vcmp.eq.s32.totalorder %v2412, %v1505
  %vm2471 = vcmp.eq.s32.totalorder %v2426, %v1506
  %vm2472 = vcmp.eq.s32.totalorder %v2440, %v1507
  %v2473 = vsel %vm2441, 1, 0
  %v2474 = vsel %vm2442, 1, 0
  %v2475 = vsel %vm2443, 1, 0
  %v2476 = vsel %vm2444, 1, 0
  %v2477 = vsel %vm2445, 1, 0
  %v2478 = vsel %vm2446, 1, 0
  %v2479 = vsel %vm2447, 1, 0
  %v2480 = vsel %vm2448, 1, 0
  %v2481 = vsel %vm2449, 1, 0
  %v2482 = vsel %vm2450, 1, 0
  %v2483 = vsel %vm2451, 1, 0
  %v2484 = vsel %vm2452, 1, 0
  %v2485 = vsel %vm2453, 1, 0
  %v2486 = vsel %vm2454, 1, 0
  %v2487 = vsel %vm2455, 1, 0
  %v2488 = vsel %vm2456, 1, 0
  %v2489 = vsel %vm2457, 1, 0
  %v2490 = vsel %vm2458, 1, 0
  %v2491 = vsel %vm2459, 1, 0
  %v2492 = vsel %vm2460, 1, 0
  %v2493 = vsel %vm2461, 1, 0
  %v2494 = vsel %vm2462, 1, 0
  %v2495 = vsel %vm2463, 1, 0
  %v2496 = vsel %vm2464, 1, 0
  %v2497 = vsel %vm2465, 1, 0
  %v2498 = vsel %vm2466, 1, 0
  %v2499 = vsel %vm2467, 1, 0
  %v2500 = vsel %vm2468, 1, 0
  %v2501 = vsel %vm2469, 1, 0
  %v2502 = vsel %vm2470, 1, 0
  %v2503 = vsel %vm2471, 1, 0
  %v2504 = vsel %vm2472, 1, 0
  %v2505 = vcvt.s32.f32 %v2473
  %v2506 = vcvt.s32.f32 %v2474
  %v2507 = vcvt.s32.f32 %v2475
  %v2508 = vcvt.s32.f32 %v2476
  %v2509 = vcvt.s32.f32 %v2477
  %v2510 = vcvt.s32.f32 %v2478
  %v2511 = vcvt.s32.f32 %v2479
  %v2512 = vcvt.s32.f32 %v2480
  %v2513 = vcvt.s32.f32 %v2481
  %v2514 = vcvt.s32.f32 %v2482
  %v2515 = vcvt.s32.f32 %v2483
  %v2516 = vcvt.s32.f32 %v2484
  %v2517 = vcvt.s32.f32 %v2485
  %v2518 = vcvt.s32.f32 %v2486
  %v2519 = vcvt.s32.f32 %v2487
  %v2520 = vcvt.s32.f32 %v2488
  %v2521 = vcvt.s32.f32 %v2489
  %v2522 = vcvt.s32.f32 %v2490
  %v2523 = vcvt.s32.f32 %v2491
  %v2524 = vcvt.s32.f32 %v2492
  %v2525 = vcvt.s32.f32 %v2493
  %v2526 = vcvt.s32.f32 %v2494
  %v2527 = vcvt.s32.f32 %v2495
  %v2528 = vcvt.s32.f32 %v2496
  %v2529 = vcvt.s32.f32 %v2497
  %v2530 = vcvt.s32.f32 %v2498
  %v2531 = vcvt.s32.f32 %v2499
  %v2532 = vcvt.s32.f32 %v2500
  %v2533 = vcvt.s32.f32 %v2501
  %v2534 = vcvt.s32.f32 %v2502
  %v2535 = vcvt.s32.f32 %v2503
  %v2536 = vcvt.s32.f32 %v2504
  %vm2537 = vcmask 7168
  %v2538 = vsel %vm2537, %v2505, 0.0
  %v2539 = vsel %vm2537, %v2506, 0.0
  %v2540 = vadd.f32 %v2538, %v2539
  %v2541 = vsel %vm2537, %v2507, 0.0
  %v2542 = vadd.f32 %v2540, %v2541
  %v2543 = vsel %vm2537, %v2508, 0.0
  %v2544 = vadd.f32 %v2542, %v2543
  %v2545 = vsel %vm2537, %v2509, 0.0
  %v2546 = vadd.f32 %v2544, %v2545
  %v2547 = vsel %vm2537, %v2510, 0.0
  %v2548 = vadd.f32 %v2546, %v2547
  %v2549 = vsel %vm2537, %v2511, 0.0
  %v2550 = vadd.f32 %v2548, %v2549
  %v2551 = vsel %vm2537, %v2512, 0.0
  %v2552 = vadd.f32 %v2550, %v2551
  %v2553 = vsel %vm2537, %v2513, 0.0
  %v2554 = vadd.f32 %v2552, %v2553
  %v2555 = vsel %vm2537, %v2514, 0.0
  %v2556 = vadd.f32 %v2554, %v2555
  %v2557 = vsel %vm2537, %v2515, 0.0
  %v2558 = vadd.f32 %v2556, %v2557
  %v2559 = vsel %vm2537, %v2516, 0.0
  %v2560 = vadd.f32 %v2558, %v2559
  %v2561 = vsel %vm2537, %v2517, 0.0
  %v2562 = vadd.f32 %v2560, %v2561
  %v2563 = vsel %vm2537, %v2518, 0.0
  %v2564 = vadd.f32 %v2562, %v2563
  %v2565 = vsel %vm2537, %v2519, 0.0
  %v2566 = vadd.f32 %v2564, %v2565
  %v2567 = vsel %vm2537, %v2520, 0.0
  %v2568 = vadd.f32 %v2566, %v2567
  %v2569 = vsel %vm2537, %v2521, 0.0
  %v2570 = vadd.f32 %v2568, %v2569
  %v2571 = vsel %vm2537, %v2522, 0.0
  %v2572 = vadd.f32 %v2570, %v2571
  %v2573 = vsel %vm2537, %v2523, 0.0
  %v2574 = vadd.f32 %v2572, %v2573
  %v2575 = vsel %vm2537, %v2524, 0.0
  %v2576 = vadd.f32 %v2574, %v2575
  %v2577 = vsel %vm2537, %v2525, 0.0
  %v2578 = vadd.f32 %v2576, %v2577
  %v2579 = vsel %vm2537, %v2526, 0.0
  %v2580 = vadd.f32 %v2578, %v2579
  %v2581 = vsel %vm2537, %v2527, 0.0
  %v2582 = vadd.f32 %v2580, %v2581
  %v2583 = vsel %vm2537, %v2528, 0.0
  %v2584 = vadd.f32 %v2582, %v2583
  %v2585 = vsel %vm2537, %v2529, 0.0
  %v2586 = vadd.f32 %v2584, %v2585
  %v2587 = vsel %vm2537, %v2530, 0.0
  %v2588 = vadd.f32 %v2586, %v2587
  %v2589 = vsel %vm2537, %v2531, 0.0
  %v2590 = vadd.f32 %v2588, %v2589
  %v2591 = vsel %vm2537, %v2532, 0.0
  %v2592 = vadd.f32 %v2590, %v2591
  %v2593 = vsel %vm2537, %v2533, 0.0
  %v2594 = vadd.f32 %v2592, %v2593
  %v2595 = vsel %vm2537, %v2534, 0.0
  %v2596 = vadd.f32 %v2594, %v2595
  %v2597 = vsel %vm2537, %v2535, 0.0
  %v2598 = vadd.f32 %v2596, %v2597
  %v2599 = vsel %vm2537, %v2536, 0.0
  %v2600 = vadd.f32 %v2598, %v2599
  %v2601 = vrot.slane %v2600, 4
  %v2602 = vadd.f32 %v2600, %v2601
  %v2603 = vrot.slane %v2602, 2
  %v2604 = vadd.f32 %v2602, %v2603
  %v2605 = vrot.slane %v2604, 1
  %v2606 = vadd.f32 %v2604, %v2605
  %v2607 = vlaneseq
  %v2608 = vshrl.u32 %v2607, 7
  %vm2609 = vcmp.eq.s32.totalorder %v2608, 0
  %vm2610 = vcmp.eq.s32.totalorder %v1026, 0
  %vm2611 = vmand %vm2609, %vm2610
  %vm2612 = vcmp.eq.s32.totalorder %v1026, 1
  %vm2613 = vmand %vm2609, %vm2612
  %2615 = vset.pattern.permute.xlu0 0
  %2616 = vperm.xlu0 %2615, %v2606
  %v2617 = vpop.permute.xlu0 %2616
  %v2619 = vsel %vm2613, %v2617, 0.0
  %v2620 = vsel %vm2611, %v1864, %v2619
  %2621 = vst [vmem:[%s9] sm:$0xff] %v2620
  // Predicated region
  $region34: #{lian_forward.1} parent=0 // pred_check
    _
  $region35: #{lian_forward.1} parent=0 // pred_check_branch
    %2623 = sbr.rel (0) target = $region37
  $region36: #{lian_forward.1} parent=0 // pred_region
    _
  $region37: #{lian_forward.1} parent=0 // pred_fallthru
    _
  // Predicated region
  $region38: #{lian_forward.1} parent=0 // pred_check
    _
  $region39: #{lian_forward.1} parent=0 // pred_check_branch
    %2625 = sbr.rel (0) target = $region41
  $region40: #{lian_forward.1} parent=0 // pred_region
    _
  $region41: #{lian_forward.1} parent=0 // pred_fallthru
    _
  // Predicated region
  $region42: #{lian_forward.1} parent=0 // pred_check
    _
  $region43: #{lian_forward.1} parent=0 // pred_check_branch
    %2627 = sbr.rel (0) target = $region45
  $region44: #{lian_forward.1} parent=0 // pred_region
    _
  $region45: #{lian_forward.1} parent=0 // pred_fallthru
    _
  // Predicated region
  $region46: #{lian_forward.1} parent=0 // pred_check
    _
  $region47: #{lian_forward.1} parent=0 // pred_check_branch
    %2629 = sbr.rel (0) target = $region49
  $region48: #{lian_forward.1} parent=0 // pred_region
    _
  $region49: #{lian_forward.1} parent=0 // pred_fallthru
    _

</llo_original>
